<compile_context>
chip_gen: v5e
topology: v5e:2x2
jax: 0.10.0
libtpu: 0.0.40
codegen_flags: <defaults>
</compile_context>

<pallas_src>
import functools

import jax
import jax.numpy as jnp
import numpy as np
from jax.experimental import pallas as pl
from jax.experimental.pallas import tpu as pltpu


# -----------------------------------------------------------------------------
# Pallas kernel: full MLP (8 hidden layers + skip + output linear), packed weights
# -----------------------------------------------------------------------------
def fern_mlp_kernel(x_ref, w_in_ref, w_hid_ref, b_ref, out_ref):
    f32, bf16 = jnp.float32, jnp.bfloat16
    W = b_ref.shape[1]

    def wblk(j):                  # (W, W) bf16 block j of the stacked hidden weights
        return w_hid_ref[j * W:(j + 1) * W, :]

    def brow(j):                  # (1, W) f32 bias row j
        return b_ref[j:j + 1, :]

    # Layer 0 fused with the skip-branch matmul of layer 5:
    #   z = x @ [w0 | w5x];  z[:, :W] is the layer-0 preact, z[:, W:] the skip term.
    z = jnp.dot(x_ref[...].astype(bf16), w_in_ref[...],
                preferred_element_type=f32)                 # (tile_n, 2W)
    skip = z[:, W:]
    h = jnp.maximum(z[:, :W] + brow(0), 0.0)

    for i in (1, 2, 3, 4):
        h = jnp.maximum(
            jnp.dot(h.astype(bf16), wblk(i - 1), preferred_element_type=f32)
            + brow(i), 0.0)

    # Layer 5 (skip): relu(cat([x, h4]) @ w5 + b5) = relu(h4 @ w5h + x @ w5x + b5)
    h = jnp.maximum(
        jnp.dot(h.astype(bf16), wblk(4), preferred_element_type=f32)
        + skip + brow(5), 0.0)

    for i in (6, 7):
        h = jnp.maximum(
            jnp.dot(h.astype(bf16), wblk(i - 1), preferred_element_type=f32)
            + brow(i), 0.0)

    # Output linear: wo zero-padded to W output lanes, bo in bias row 8.
    out_ref[...] = (jnp.dot(h.astype(bf16), wblk(7), preferred_element_type=f32)
                    + brow(8)).astype(out_ref.dtype)


# -----------------------------------------------------------------------------
# Wrapper: pack params, pick grid (1 step; 2 parallel steps on v7x), pallas_call
# -----------------------------------------------------------------------------
def _num_tiles_for_device():
    try:
        kind = jax.devices()[0].device_kind.lower().replace(" ", "")
    except Exception:
        return 1
    return 2 if ("v7" in kind or "tpu7" in kind) else 1


def _pack_fern_params(params):
    W = params["b0"].shape[1]
    out_ch = params["wo"].shape[1]
    bf16 = jnp.bfloat16
    # [w0 | w5x] : (input_ch, 2W)
    w_in = jnp.concatenate([params["w0"], params["w5x"]], axis=1).astype(bf16)
    # hidden weights stacked along sublanes (tile-aligned static slices): (8W, W)
    wo_pad = jnp.pad(params["wo"], ((0, 0), (0, W - out_ch)))
    w_hid = jnp.concatenate(
        [params["w1"], params["w2"], params["w3"], params["w4"],
         params["w5h"], params["w6"], params["w7"], wo_pad],
        axis=0).astype(bf16)
    # biases b0..b7 then padded bo : (9, W) f32
    bo_pad = jnp.pad(params["bo"], ((0, 0), (0, W - out_ch)))
    biases = jnp.concatenate([params[f"b{i}"] for i in range(8)] + [bo_pad],
                             axis=0)
    return w_in, w_hid, biases


def fern_mlp_pallas(patchstack, params):
    n, input_ch = patchstack.shape
    W = params["b0"].shape[1]
    w_in, w_hid, biases = _pack_fern_params(params)

    n_tiles = _num_tiles_for_device()
    if n_tiles == 1:
        # Single grid step: block == full array, no row padding needed.
        tile_n, n_pad, x = n, n, patchstack
    else:
        tile_n = ((n + n_tiles - 1) // n_tiles + 7) // 8 * 8
        n_pad = tile_n * n_tiles
        x = jnp.pad(patchstack, ((0, n_pad - n), (0, 0)))

    def const_spec(a):
        return pl.BlockSpec(a.shape, lambda i: (0, 0))

    out = pl.pallas_call(
        fern_mlp_kernel,
        out_shape=jax.ShapeDtypeStruct((n_pad, W), jnp.float32),
        grid_spec=pltpu.PrefetchScalarGridSpec(
            num_scalar_prefetch=0,
            grid=(n_tiles,),
            in_specs=[pl.BlockSpec((tile_n, input_ch), lambda i: (i, 0)),
                      const_spec(w_in), const_spec(w_hid), const_spec(biases)],
            out_specs=pl.BlockSpec((tile_n, W), lambda i: (i, 0)),
        ),
        compiler_params=pltpu.CompilerParams(
            dimension_semantics=("parallel",)),
    )(x, w_in, w_hid, biases)
    return out  # (n_pad, W); caller slices [:n, :output_ch]


# -----------------------------------------------------------------------------
# Full forward: patch extraction (getPatch) -> Pallas MLP -> scatter-add (GcT)
# -----------------------------------------------------------------------------
def fern_forward(y, params, *, imsize=16, psize=3):
    y_img = y.reshape(-1, imsize, imsize)
    B = y_img.shape[0]
    P = imsize - psize            # PyTorch loops use range(imsize - psize)
    out_ch = params["wo"].shape[1]

    rows = jnp.arange(P)[:, None] + jnp.arange(psize)[None, :]   # (P, psize)
    r_idx = rows[:, None, :, None]                               # (P,1,ps,1)
    c_idx = rows[None, :, None, :]                               # (1,P,1,ps)

    # getPatch: (B, P, P, ps, ps) -> count-major stack (P*P*B, ps*ps)
    patches = y_img[:, r_idx, c_idx]
    patchstack = jnp.transpose(patches, (1, 2, 0, 3, 4)).reshape(
        P * P * B, psize * psize)

    # TODO(synk): at production imsize, do the patch gather / scatter-add inside
    # the kernel (pl.Element index maps / manual DMA) to avoid ~psize^2 HBM
    # read amplification; negligible at imsize=16.
    mlp_out = fern_mlp_pallas(patchstack, params)                # (n_pad, W)
    outputs = mlp_out[:P * P * B, :out_ch]                       # (P*P*B, 9)

    # GcT: transposed scatter-add of overlapping patches back into the image.
    out_patches = outputs.reshape(P, P, B, psize, psize).transpose(2, 0, 1, 3, 4)
    out = jnp.zeros((B, imsize, imsize), jnp.float32)
    out = out.at[:, r_idx, c_idx].add(out_patches)
    return out.reshape(B, imsize * imsize)


# -----------------------------------------------------------------------------
# Pure-JAX reference (mirrors the PyTorch code, incl. explicit skip concat)
# -----------------------------------------------------------------------------
def fern_forward_ref(y, params, *, imsize=16, psize=3):
    prec = jax.lax.Precision.HIGHEST
    y_img = y.reshape(-1, imsize, imsize)
    B = y_img.shape[0]
    P = imsize - psize
    rows = jnp.arange(P)[:, None] + jnp.arange(psize)[None, :]
    r_idx = rows[:, None, :, None]
    c_idx = rows[None, :, None, :]
    patches = y_img[:, r_idx, c_idx]
    x = jnp.transpose(patches, (1, 2, 0, 3, 4)).reshape(P * P * B, psize * psize)

    def dense(h, w, b):
        return jnp.dot(h, w, precision=prec) + b

    h = jax.nn.relu(dense(x, params["w0"], params["b0"]))
    for i in (1, 2, 3, 4):
        h = jax.nn.relu(dense(h, params[f"w{i}"], params[f"b{i}"]))
    h = jnp.concatenate([x, h], axis=-1)
    w5 = jnp.concatenate([params["w5x"], params["w5h"]], axis=0)
    h = jax.nn.relu(dense(h, w5, params["b5"]))
    for i in (6, 7):
        h = jax.nn.relu(dense(h, params[f"w{i}"], params[f"b{i}"]))
    outputs = dense(h, params["wo"], params["bo"])

    out_patches = outputs.reshape(P, P, B, psize, psize).transpose(2, 0, 1, 3, 4)
    out = jnp.zeros((B, imsize, imsize), jnp.float32)
    out = out.at[:, r_idx, c_idx].add(out_patches)
    return out.reshape(B, imsize * imsize)


# -----------------------------------------------------------------------------
# Deterministic parameter init (torch.nn.Linear-style uniform, but synthetic)
# -----------------------------------------------------------------------------
def init_fern_params(key, *, W=64, input_ch=9, output_ch=9):
    keys = jax.random.split(key, 16)

    def linear(k, fan_in, fan_out):
        kw, kb = jax.random.split(k)
        bound = 1.0 / np.sqrt(fan_in)
        w = jax.random.uniform(kw, (fan_in, fan_out), jnp.float32, -bound, bound)
        b = jax.random.uniform(kb, (1, fan_out), jnp.float32, -bound, bound)
        return w, b

    p = {}
    p["w0"], p["b0"] = linear(keys[0], input_ch, W)
    for i in range(1, 8):
        fan_in = W + input_ch if i == 5 else W    # skip layer (skips=[4])
        w, b = linear(keys[i], fan_in, W)
        if i == 5:
            p["w5x"], p["w5h"], p["b5"] = w[:input_ch], w[input_ch:], b
        else:
            p[f"w{i}"], p[f"b{i}"] = w, b
    p["wo"], p["bo"] = linear(keys[8], W, output_ch)
    return p


if __name__ == "__main__":
    # Small config: D=8, W=64, input_ch=9 (psize=3), output_ch=9, imsize=16, B=2
    B, imsize, psize, W_hidden = 2, 16, 3, 64

    key = jax.random.PRNGKey(0)
    k_param, k_in = jax.random.split(key)
    params = init_fern_params(k_param, W=W_hidden, input_ch=psize * psize,
                              output_ch=psize * psize)
    y = jax.random.normal(k_in, (B, imsize * imsize), jnp.float32)

    run = jax.jit(functools.partial(fern_forward, imsize=imsize, psize=psize))
    out = run(y, params)
    jax.block_until_ready(out)

    ref = fern_forward_ref(y, params, imsize=imsize, psize=psize)
    assert out.shape == (B, imsize * imsize), out.shape
    np.testing.assert_allclose(np.asarray(out), np.asarray(ref),
                               rtol=1e-2, atol=1e-2)
    print("KERNEL_OK")
</pallas_src>

<mosaic_0001>
module attributes {stable_mosaic.version = 11 : i64} {
  func.func @fern_mlp_kernel(%arg0: i32, %arg1: memref<338x9xf32, #tpu.memory_space<vmem>>, %arg2: memref<9x128xbf16, #tpu.memory_space<vmem>>, %arg3: memref<512x64xbf16, #tpu.memory_space<vmem>>, %arg4: memref<9x64xf32, #tpu.memory_space<vmem>>, %arg5: memref<338x64xf32, #tpu.memory_space<vmem>>) attributes {dimension_semantics = [#tpu.dimension_semantics<parallel>], iteration_bounds = array<i64: 1>, scalar_prefetch = 0 : i64, scratch_operands = 0 : i64, tpu.core_type = #tpu.core_type<tc>, window_params = [{transform_indices = @transform_0, window_bounds = array<i64: 338, 9>}, {pipeline_mode = #tpu.pipeline_mode<synchronous>, transform_indices = @transform_1, window_bounds = array<i64: 9, 128>}, {pipeline_mode = #tpu.pipeline_mode<synchronous>, transform_indices = @transform_2, window_bounds = array<i64: 512, 64>}, {pipeline_mode = #tpu.pipeline_mode<synchronous>, transform_indices = @transform_3, window_bounds = array<i64: 9, 64>}, {transform_indices = @transform_4, window_bounds = array<i64: 338, 64>}]} {
    %c0 = arith.constant 0 : index
    %c0_0 = arith.constant 0 : index
    %0 = vector.load %arg1[%c0, %c0_0] : memref<338x9xf32, #tpu.memory_space<vmem>>, vector<338x9xf32>
    %1 = arith.truncf %0 : vector<338x9xf32> to vector<338x9xbf16>
    %c0_1 = arith.constant 0 : index
    %c0_2 = arith.constant 0 : index
    %2 = vector.load %arg2[%c0_1, %c0_2] : memref<9x128xbf16, #tpu.memory_space<vmem>>, vector<9x128xbf16>
    %cst = arith.constant dense<0.000000e+00> : vector<338x128xf32>
    %3 = tpu.matmul %1, %2, %cst {dimension_numbers = #tpu.dot_dimension_numbers<[1], [0], [0], [1], [0, 0, 1, 1], [], []>} : vector<338x9xbf16>, vector<9x128xbf16>, vector<338x128xf32> -> vector<338x128xf32>
    %4 = vector.extract_strided_slice %3 {offsets = [0, 64], sizes = [338, 64], strides = [1, 1]} : vector<338x128xf32> to vector<338x64xf32>
    %5 = vector.extract_strided_slice %3 {offsets = [0, 0], sizes = [338, 64], strides = [1, 1]} : vector<338x128xf32> to vector<338x64xf32>
    %c0_3 = arith.constant 0 : index
    %c0_4 = arith.constant 0 : index
    %6 = vector.load %arg4[%c0_3, %c0_4] : memref<9x64xf32, #tpu.memory_space<vmem>>, vector<1x64xf32>
    %7 = vector.broadcast %6 : vector<1x64xf32> to vector<338x64xf32>
    %8 = arith.addf %5, %7 : vector<338x64xf32>
    %cst_5 = arith.constant 0.000000e+00 : f32
    %9 = vector.broadcast %cst_5 : f32 to vector<338x64xf32>
    %10 = arith.maximumf %8, %9 : vector<338x64xf32>
    %11 = arith.truncf %10 : vector<338x64xf32> to vector<338x64xbf16>
    %c0_6 = arith.constant 0 : index
    %c0_7 = arith.constant 0 : index
    %12 = vector.load %arg3[%c0_6, %c0_7] : memref<512x64xbf16, #tpu.memory_space<vmem>>, vector<64x64xbf16>
    %cst_8 = arith.constant dense<0.000000e+00> : vector<338x64xf32>
    %13 = tpu.matmul %11, %12, %cst_8 {dimension_numbers = #tpu.dot_dimension_numbers<[1], [0], [0], [1], [0, 0, 1, 1], [], []>} : vector<338x64xbf16>, vector<64x64xbf16>, vector<338x64xf32> -> vector<338x64xf32>
    %c1 = arith.constant 1 : index
    %c0_9 = arith.constant 0 : index
    %14 = vector.load %arg4[%c1, %c0_9] : memref<9x64xf32, #tpu.memory_space<vmem>>, vector<1x64xf32>
    %15 = vector.broadcast %14 : vector<1x64xf32> to vector<338x64xf32>
    %16 = arith.addf %13, %15 : vector<338x64xf32>
    %cst_10 = arith.constant 0.000000e+00 : f32
    %17 = vector.broadcast %cst_10 : f32 to vector<338x64xf32>
    %18 = arith.maximumf %16, %17 : vector<338x64xf32>
    %19 = arith.truncf %18 : vector<338x64xf32> to vector<338x64xbf16>
    %c64 = arith.constant 64 : index
    %c0_11 = arith.constant 0 : index
    %20 = vector.load %arg3[%c64, %c0_11] : memref<512x64xbf16, #tpu.memory_space<vmem>>, vector<64x64xbf16>
    %cst_12 = arith.constant dense<0.000000e+00> : vector<338x64xf32>
    %21 = tpu.matmul %19, %20, %cst_12 {dimension_numbers = #tpu.dot_dimension_numbers<[1], [0], [0], [1], [0, 0, 1, 1], [], []>} : vector<338x64xbf16>, vector<64x64xbf16>, vector<338x64xf32> -> vector<338x64xf32>
    %c2 = arith.constant 2 : index
    %c0_13 = arith.constant 0 : index
    %22 = vector.load %arg4[%c2, %c0_13] : memref<9x64xf32, #tpu.memory_space<vmem>>, vector<1x64xf32>
    %23 = vector.broadcast %22 : vector<1x64xf32> to vector<338x64xf32>
    %24 = arith.addf %21, %23 : vector<338x64xf32>
    %cst_14 = arith.constant 0.000000e+00 : f32
    %25 = vector.broadcast %cst_14 : f32 to vector<338x64xf32>
    %26 = arith.maximumf %24, %25 : vector<338x64xf32>
    %27 = arith.truncf %26 : vector<338x64xf32> to vector<338x64xbf16>
    %c128 = arith.constant 128 : index
    %c0_15 = arith.constant 0 : index
    %28 = vector.load %arg3[%c128, %c0_15] : memref<512x64xbf16, #tpu.memory_space<vmem>>, vector<64x64xbf16>
    %cst_16 = arith.constant dense<0.000000e+00> : vector<338x64xf32>
    %29 = tpu.matmul %27, %28, %cst_16 {dimension_numbers = #tpu.dot_dimension_numbers<[1], [0], [0], [1], [0, 0, 1, 1], [], []>} : vector<338x64xbf16>, vector<64x64xbf16>, vector<338x64xf32> -> vector<338x64xf32>
    %c3 = arith.constant 3 : index
    %c0_17 = arith.constant 0 : index
    %30 = vector.load %arg4[%c3, %c0_17] : memref<9x64xf32, #tpu.memory_space<vmem>>, vector<1x64xf32>
    %31 = vector.broadcast %30 : vector<1x64xf32> to vector<338x64xf32>
    %32 = arith.addf %29, %31 : vector<338x64xf32>
    %cst_18 = arith.constant 0.000000e+00 : f32
    %33 = vector.broadcast %cst_18 : f32 to vector<338x64xf32>
    %34 = arith.maximumf %32, %33 : vector<338x64xf32>
    %35 = arith.truncf %34 : vector<338x64xf32> to vector<338x64xbf16>
    %c192 = arith.constant 192 : index
    %c0_19 = arith.constant 0 : index
    %36 = vector.load %arg3[%c192, %c0_19] : memref<512x64xbf16, #tpu.memory_space<vmem>>, vector<64x64xbf16>
    %cst_20 = arith.constant dense<0.000000e+00> : vector<338x64xf32>
    %37 = tpu.matmul %35, %36, %cst_20 {dimension_numbers = #tpu.dot_dimension_numbers<[1], [0], [0], [1], [0, 0, 1, 1], [], []>} : vector<338x64xbf16>, vector<64x64xbf16>, vector<338x64xf32> -> vector<338x64xf32>
    %c4 = arith.constant 4 : index
    %c0_21 = arith.constant 0 : index
    %38 = vector.load %arg4[%c4, %c0_21] : memref<9x64xf32, #tpu.memory_space<vmem>>, vector<1x64xf32>
    %39 = vector.broadcast %38 : vector<1x64xf32> to vector<338x64xf32>
    %40 = arith.addf %37, %39 : vector<338x64xf32>
    %cst_22 = arith.constant 0.000000e+00 : f32
    %41 = vector.broadcast %cst_22 : f32 to vector<338x64xf32>
    %42 = arith.maximumf %40, %41 : vector<338x64xf32>
    %43 = arith.truncf %42 : vector<338x64xf32> to vector<338x64xbf16>
    %c256 = arith.constant 256 : index
    %c0_23 = arith.constant 0 : index
    %44 = vector.load %arg3[%c256, %c0_23] : memref<512x64xbf16, #tpu.memory_space<vmem>>, vector<64x64xbf16>
    %cst_24 = arith.constant dense<0.000000e+00> : vector<338x64xf32>
    %45 = tpu.matmul %43, %44, %cst_24 {dimension_numbers = #tpu.dot_dimension_numbers<[1], [0], [0], [1], [0, 0, 1, 1], [], []>} : vector<338x64xbf16>, vector<64x64xbf16>, vector<338x64xf32> -> vector<338x64xf32>
    %46 = arith.addf %45, %4 : vector<338x64xf32>
    %c5 = arith.constant 5 : index
    %c0_25 = arith.constant 0 : index
    %47 = vector.load %arg4[%c5, %c0_25] : memref<9x64xf32, #tpu.memory_space<vmem>>, vector<1x64xf32>
    %48 = vector.broadcast %47 : vector<1x64xf32> to vector<338x64xf32>
    %49 = arith.addf %46, %48 : vector<338x64xf32>
    %cst_26 = arith.constant 0.000000e+00 : f32
    %50 = vector.broadcast %cst_26 : f32 to vector<338x64xf32>
    %51 = arith.maximumf %49, %50 : vector<338x64xf32>
    %52 = arith.truncf %51 : vector<338x64xf32> to vector<338x64xbf16>
    %c320 = arith.constant 320 : index
    %c0_27 = arith.constant 0 : index
    %53 = vector.load %arg3[%c320, %c0_27] : memref<512x64xbf16, #tpu.memory_space<vmem>>, vector<64x64xbf16>
    %cst_28 = arith.constant dense<0.000000e+00> : vector<338x64xf32>
    %54 = tpu.matmul %52, %53, %cst_28 {dimension_numbers = #tpu.dot_dimension_numbers<[1], [0], [0], [1], [0, 0, 1, 1], [], []>} : vector<338x64xbf16>, vector<64x64xbf16>, vector<338x64xf32> -> vector<338x64xf32>
    %c6 = arith.constant 6 : index
    %c0_29 = arith.constant 0 : index
    %55 = vector.load %arg4[%c6, %c0_29] : memref<9x64xf32, #tpu.memory_space<vmem>>, vector<1x64xf32>
    %56 = vector.broadcast %55 : vector<1x64xf32> to vector<338x64xf32>
    %57 = arith.addf %54, %56 : vector<338x64xf32>
    %cst_30 = arith.constant 0.000000e+00 : f32
    %58 = vector.broadcast %cst_30 : f32 to vector<338x64xf32>
    %59 = arith.maximumf %57, %58 : vector<338x64xf32>
    %60 = arith.truncf %59 : vector<338x64xf32> to vector<338x64xbf16>
    %c384 = arith.constant 384 : index
    %c0_31 = arith.constant 0 : index
    %61 = vector.load %arg3[%c384, %c0_31] : memref<512x64xbf16, #tpu.memory_space<vmem>>, vector<64x64xbf16>
    %cst_32 = arith.constant dense<0.000000e+00> : vector<338x64xf32>
    %62 = tpu.matmul %60, %61, %cst_32 {dimension_numbers = #tpu.dot_dimension_numbers<[1], [0], [0], [1], [0, 0, 1, 1], [], []>} : vector<338x64xbf16>, vector<64x64xbf16>, vector<338x64xf32> -> vector<338x64xf32>
    %c7 = arith.constant 7 : index
    %c0_33 = arith.constant 0 : index
    %63 = vector.load %arg4[%c7, %c0_33] : memref<9x64xf32, #tpu.memory_space<vmem>>, vector<1x64xf32>
    %64 = vector.broadcast %63 : vector<1x64xf32> to vector<338x64xf32>
    %65 = arith.addf %62, %64 : vector<338x64xf32>
    %cst_34 = arith.constant 0.000000e+00 : f32
    %66 = vector.broadcast %cst_34 : f32 to vector<338x64xf32>
    %67 = arith.maximumf %65, %66 : vector<338x64xf32>
    %68 = arith.truncf %67 : vector<338x64xf32> to vector<338x64xbf16>
    %c448 = arith.constant 448 : index
    %c0_35 = arith.constant 0 : index
    %69 = vector.load %arg3[%c448, %c0_35] : memref<512x64xbf16, #tpu.memory_space<vmem>>, vector<64x64xbf16>
    %cst_36 = arith.constant dense<0.000000e+00> : vector<338x64xf32>
    %70 = tpu.matmul %68, %69, %cst_36 {dimension_numbers = #tpu.dot_dimension_numbers<[1], [0], [0], [1], [0, 0, 1, 1], [], []>} : vector<338x64xbf16>, vector<64x64xbf16>, vector<338x64xf32> -> vector<338x64xf32>
    %c8 = arith.constant 8 : index
    %c0_37 = arith.constant 0 : index
    %71 = vector.load %arg4[%c8, %c0_37] : memref<9x64xf32, #tpu.memory_space<vmem>>, vector<1x64xf32>
    %72 = vector.broadcast %71 : vector<1x64xf32> to vector<338x64xf32>
    %73 = arith.addf %70, %72 : vector<338x64xf32>
    %c0_38 = arith.constant 0 : index
    %c0_39 = arith.constant 0 : index
    %74 = vector.load %arg5[%c0_38, %c0_39] : memref<338x64xf32, #tpu.memory_space<vmem>>, vector<338x64xf32>
    tpu.vector_store %arg5[%c0_38, %c0_39], %73 {strides = array<i32>} : memref<338x64xf32, #tpu.memory_space<vmem>>, vector<338x64xf32>,
    return
  }
  func.func @transform_0(%arg0: i32) -> (i32, i32) {
    %c0_i32 = arith.constant 0 : i32
    %c0_i32_0 = arith.constant 0 : i32
    return %arg0, %c0_i32 : i32, i32
  }
  func.func @transform_1(%arg0: i32) -> (i32, i32) {
    %c0_i32 = arith.constant 0 : i32
    %c0_i32_0 = arith.constant 0 : i32
    %c0_i32_1 = arith.constant 0 : i32
    return %c0_i32, %c0_i32_0 : i32, i32
  }
  func.func @transform_2(%arg0: i32) -> (i32, i32) {
    %c0_i32 = arith.constant 0 : i32
    %c0_i32_0 = arith.constant 0 : i32
    %c0_i32_1 = arith.constant 0 : i32
    return %c0_i32, %c0_i32_0 : i32, i32
  }
  func.func @transform_3(%arg0: i32) -> (i32, i32) {
    %c0_i32 = arith.constant 0 : i32
    %c0_i32_0 = arith.constant 0 : i32
    %c0_i32_1 = arith.constant 0 : i32
    return %c0_i32, %c0_i32_0 : i32, i32
  }
  func.func @transform_4(%arg0: i32) -> (i32, i32) {
    %c0_i32 = arith.constant 0 : i32
    %c0_i32_0 = arith.constant 0 : i32
    return %arg0, %c0_i32 : i32, i32
  }
}

</mosaic_0001>

<llo_original>
// kernel: fern_forward.1
$region0: #{fern_forward.1}
  #allocation0 [shape = 'u32[]', space=smem, size = 0x4, offset = 0x4, fixed_abs, tag = 'smem constant byte address 0x4 - core index']
  #allocation1 [shape = 'u32[72,128]{1,0:T(1,128)}', space=vmem, size = 0x9000, scoped, tag = 'internal scratch']
  %s0 = inlined_call_operand.vmem [shape: f32[338,9], index: 0, kind: input, shape index: {}]
  %s1 = inlined_call_operand.vmem [shape: bf16[9,128], index: 1, kind: input, shape index: {}]
  %s2 = inlined_call_operand.vmem [shape: bf16[512,64], index: 2, kind: input, shape index: {}]
  %s3 = inlined_call_operand.vmem [shape: f32[9,64], index: 3, kind: input, shape index: {}]
  %s4 = inlined_call_operand.vmem [shape: f32[338,64], index: 4, kind: output, shape index: {}]
  %s5 = sld [smem:[#allocation0]]
  $region26: #{fern_forward.1} parent=0
    _
  %s7 = ssub.s32 1, %s5
  %s8 = scalar_select 0, %s7, %s5
  // Predicated region
  $region2: #{fern_forward.1} parent=0 // pred_check
    _
  $region3: #{fern_forward.1} parent=0 // pred_check_branch
    %10 = sbr.rel (0) target = $region5
  $region4: #{fern_forward.1} parent=0 // pred_region
    _
  $region5: #{fern_forward.1} parent=0 // pred_fallthru
    _
  // Predicated region
  $region6: #{fern_forward.1} parent=0 // pred_check
    _
  $region7: #{fern_forward.1} parent=0 // pred_check_branch
    %12 = sbr.rel (0) target = $region9
  $region8: #{fern_forward.1} parent=0 // pred_region
    _
  $region9: #{fern_forward.1} parent=0 // pred_fallthru
    _
  // Predicated region
  $region10: #{fern_forward.1} parent=0 // pred_check
    _
  $region11: #{fern_forward.1} parent=0 // pred_check_branch
    %14 = sbr.rel (0) target = $region13
  $region12: #{fern_forward.1} parent=0 // pred_region
    _
  $region13: #{fern_forward.1} parent=0 // pred_fallthru
    _
  // Predicated region
  $region14: #{fern_forward.1} parent=0 // pred_check
    _
  $region15: #{fern_forward.1} parent=0 // pred_check_branch
    %16 = sbr.rel (0) target = $region17
  $region16: #{fern_forward.1} parent=0 // pred_region
    _
  $region17: #{fern_forward.1} parent=0 // pred_fallthru
    _
  %v18 = vld [vmem:[%s0] sm:$0xff]
  %v19 = vld [vmem:[%s0 + $0x8] sm:$0xff]
  %v20 = vld [vmem:[%s0 + $0x10] sm:$0xff]
  %v21 = vld [vmem:[%s0 + $0x18] sm:$0xff]
  %v22 = vld [vmem:[%s0 + $0x20] sm:$0xff]
  %v23 = vld [vmem:[%s0 + $0x28] sm:$0xff]
  %v24 = vld [vmem:[%s0 + $0x30] sm:$0xff]
  %v25 = vld [vmem:[%s0 + $0x38] sm:$0xff]
  %v26 = vld [vmem:[%s0 + $0x40] sm:$0xff]
  %v27 = vld [vmem:[%s0 + $0x48] sm:$0xff]
  %v28 = vld [vmem:[%s0 + $0x50] sm:$0xff]
  %v29 = vld [vmem:[%s0 + $0x58] sm:$0xff]
  %v30 = vld [vmem:[%s0 + $0x60] sm:$0xff]
  %v31 = vld [vmem:[%s0 + $0x68] sm:$0xff]
  %v32 = vld [vmem:[%s0 + $0x70] sm:$0xff]
  %v33 = vld [vmem:[%s0 + $0x78] sm:$0xff]
  %v34 = vld [vmem:[%s0 + $0x80] sm:$0xff]
  %v35 = vld [vmem:[%s0 + $0x88] sm:$0xff]
  %v36 = vld [vmem:[%s0 + $0x90] sm:$0xff]
  %v37 = vld [vmem:[%s0 + $0x98] sm:$0xff]
  %v38 = vld [vmem:[%s0 + $0xa0] sm:$0xff]
  %v39 = vld [vmem:[%s0 + $0xa8] sm:$0xff]
  %v40 = vld [vmem:[%s0 + $0xb0] sm:$0xff]
  %v41 = vld [vmem:[%s0 + $0xb8] sm:$0xff]
  %v42 = vld [vmem:[%s0 + $0xc0] sm:$0xff]
  %v43 = vld [vmem:[%s0 + $0xc8] sm:$0xff]
  %v44 = vld [vmem:[%s0 + $0xd0] sm:$0xff]
  %v45 = vld [vmem:[%s0 + $0xd8] sm:$0xff]
  %v46 = vld [vmem:[%s0 + $0xe0] sm:$0xff]
  %v47 = vld [vmem:[%s0 + $0xe8] sm:$0xff]
  %v48 = vld [vmem:[%s0 + $0xf0] sm:$0xff]
  %v49 = vld [vmem:[%s0 + $0xf8] sm:$0xff]
  %v50 = vld [vmem:[%s0 + $0x100] sm:$0xff]
  %v51 = vld [vmem:[%s0 + $0x108] sm:$0xff]
  %v52 = vld [vmem:[%s0 + $0x110] sm:$0xff]
  %v53 = vld [vmem:[%s0 + $0x118] sm:$0xff]
  %v54 = vld [vmem:[%s0 + $0x120] sm:$0xff]
  %v55 = vld [vmem:[%s0 + $0x128] sm:$0xff]
  %v56 = vld [vmem:[%s0 + $0x130] sm:$0xff]
  %v57 = vld [vmem:[%s0 + $0x138] sm:$0xff]
  %v58 = vld [vmem:[%s0 + $0x140] sm:$0xff]
  %v59 = vld [vmem:[%s0 + $0x148] sm:$0xff]
  %v60 = vld [vmem:[%s0 + $0x150] sm:$0x3]
  %v61 = vpack.c.bf16 %v19, %v18
  %v62 = vpack.c.bf16 %v21, %v20
  %v63 = vpack.c.bf16 %v23, %v22
  %v64 = vpack.c.bf16 %v25, %v24
  %v65 = vpack.c.bf16 %v27, %v26
  %v66 = vpack.c.bf16 %v29, %v28
  %v67 = vpack.c.bf16 %v31, %v30
  %v68 = vpack.c.bf16 %v33, %v32
  %v69 = vpack.c.bf16 %v35, %v34
  %v70 = vpack.c.bf16 %v37, %v36
  %v71 = vpack.c.bf16 %v39, %v38
  %v72 = vpack.c.bf16 %v41, %v40
  %v73 = vpack.c.bf16 %v43, %v42
  %v74 = vpack.c.bf16 %v45, %v44
  %v75 = vpack.c.bf16 %v47, %v46
  %v76 = vpack.c.bf16 %v49, %v48
  %v77 = vpack.c.bf16 %v51, %v50
  %v78 = vpack.c.bf16 %v53, %v52
  %v79 = vpack.c.bf16 %v55, %v54
  %v80 = vpack.c.bf16 %v57, %v56
  %v81 = vpack.c.bf16 %v59, %v58
  %v82 = vpack.c.bf16 %v60, %v60
  %v83 = vld [vmem:[%s1] sm:$0xf]
  %v84 = vld [vmem:[%s1 + $0x4] sm:$0x1]
  %v87 = vunpack.c.l.b16 %v83
  %v88 = vunpack.c.l.b16 %v84
  %v89 = vpack.c.b16 %v88, %v87
  %vm90 = vcmask 72704
  %v92 = vsel %vm90, %v61, 0
  %v95 = vsel %vm90, %v62, 0
  %v98 = vsel %vm90, %v63, 0
  %v101 = vsel %vm90, %v64, 0
  %v104 = vsel %vm90, %v65, 0
  %v107 = vsel %vm90, %v66, 0
  %v110 = vsel %vm90, %v67, 0
  %v113 = vsel %vm90, %v68, 0
  %v116 = vsel %vm90, %v69, 0
  %v119 = vsel %vm90, %v70, 0
  %v122 = vsel %vm90, %v71, 0
  %v125 = vsel %vm90, %v72, 0
  %v128 = vsel %vm90, %v73, 0
  %v131 = vsel %vm90, %v74, 0
  %v134 = vsel %vm90, %v75, 0
  %v137 = vsel %vm90, %v76, 0
  %v140 = vsel %vm90, %v77, 0
  %v143 = vsel %vm90, %v78, 0
  %v146 = vsel %vm90, %v79, 0
  %v149 = vsel %vm90, %v80, 0
  %v152 = vsel %vm90, %v81, 0
  %v155 = vsel %vm90, %v82, 0
  %vm157 = vcmask 1043456
  %vm158 = vcmask 1044480
  %v159 = vsel %vm157, 4294967295, 65535
  %v160 = vsel %vm158, %v159, 0
  %v162 = vand.u32 %v89, %v160
  %164 = vmatpush.bf16.msra.mxu0 0
  %165 = vmatpush.bf16.msra.mxu0 0
  %166 = vmatpush.bf16.msra.mxu0 0
  %167 = vmatpush.bf16.msra.mxu0 0
  %168 = vmatpush.bf16.msra.mxu0 0
  %169 = vmatpush.bf16.msra.mxu0 0
  %170 = vmatpush.bf16.msra.mxu0 0
  %171 = vmatpush.bf16.msra.mxu0 %v162
  %172 = vmatmul.bf16.gmra.mxu0 %v92
  %v173 = vpop.f32.mrf.mxu0
  %v174 = vadd.f32 0.0, %v173
  %v175 = vpop.f32.mrf.mxu0
  %v176 = vadd.f32 0.0, %v175
  %177 = vmatmul.bf16.gmra.mxu0 %v95
  %v178 = vpop.f32.mrf.mxu0
  %v179 = vadd.f32 0.0, %v178
  %v180 = vpop.f32.mrf.mxu0
  %v181 = vadd.f32 0.0, %v180
  %182 = vmatmul.bf16.gmra.mxu0 %v98
  %v183 = vpop.f32.mrf.mxu0
  %v184 = vadd.f32 0.0, %v183
  %v185 = vpop.f32.mrf.mxu0
  %v186 = vadd.f32 0.0, %v185
  %187 = vmatmul.bf16.gmra.mxu0 %v101
  %v188 = vpop.f32.mrf.mxu0
  %v189 = vadd.f32 0.0, %v188
  %v190 = vpop.f32.mrf.mxu0
  %v191 = vadd.f32 0.0, %v190
  %192 = vmatmul.bf16.gmra.mxu0 %v104
  %v193 = vpop.f32.mrf.mxu0
  %v194 = vadd.f32 0.0, %v193
  %v195 = vpop.f32.mrf.mxu0
  %v196 = vadd.f32 0.0, %v195
  %197 = vmatmul.bf16.gmra.mxu0 %v107
  %v198 = vpop.f32.mrf.mxu0
  %v199 = vadd.f32 0.0, %v198
  %v200 = vpop.f32.mrf.mxu0
  %v201 = vadd.f32 0.0, %v200
  %202 = vmatmul.bf16.gmra.mxu0 %v110
  %v203 = vpop.f32.mrf.mxu0
  %v204 = vadd.f32 0.0, %v203
  %v205 = vpop.f32.mrf.mxu0
  %v206 = vadd.f32 0.0, %v205
  %207 = vmatmul.bf16.gmra.mxu0 %v113
  %v208 = vpop.f32.mrf.mxu0
  %v209 = vadd.f32 0.0, %v208
  %v210 = vpop.f32.mrf.mxu0
  %v211 = vadd.f32 0.0, %v210
  %212 = vmatmul.bf16.gmra.mxu0 %v116
  %v213 = vpop.f32.mrf.mxu0
  %v214 = vadd.f32 0.0, %v213
  %v215 = vpop.f32.mrf.mxu0
  %v216 = vadd.f32 0.0, %v215
  %217 = vmatmul.bf16.gmra.mxu0 %v119
  %v218 = vpop.f32.mrf.mxu0
  %v219 = vadd.f32 0.0, %v218
  %v220 = vpop.f32.mrf.mxu0
  %v221 = vadd.f32 0.0, %v220
  %222 = vmatmul.bf16.gmra.mxu0 %v122
  %v223 = vpop.f32.mrf.mxu0
  %v224 = vadd.f32 0.0, %v223
  %v225 = vpop.f32.mrf.mxu0
  %v226 = vadd.f32 0.0, %v225
  %227 = vmatmul.bf16.gmra.mxu0 %v125
  %v228 = vpop.f32.mrf.mxu0
  %v229 = vadd.f32 0.0, %v228
  %v230 = vpop.f32.mrf.mxu0
  %v231 = vadd.f32 0.0, %v230
  %232 = vmatmul.bf16.gmra.mxu0 %v128
  %v233 = vpop.f32.mrf.mxu0
  %v234 = vadd.f32 0.0, %v233
  %v235 = vpop.f32.mrf.mxu0
  %v236 = vadd.f32 0.0, %v235
  %237 = vmatmul.bf16.gmra.mxu0 %v131
  %v238 = vpop.f32.mrf.mxu0
  %v239 = vadd.f32 0.0, %v238
  %v240 = vpop.f32.mrf.mxu0
  %v241 = vadd.f32 0.0, %v240
  %242 = vmatmul.bf16.gmra.mxu0 %v134
  %v243 = vpop.f32.mrf.mxu0
  %v244 = vadd.f32 0.0, %v243
  %v245 = vpop.f32.mrf.mxu0
  %v246 = vadd.f32 0.0, %v245
  %247 = vmatmul.bf16.gmra.mxu0 %v137
  %v248 = vpop.f32.mrf.mxu0
  %v249 = vadd.f32 0.0, %v248
  %v250 = vpop.f32.mrf.mxu0
  %v251 = vadd.f32 0.0, %v250
  %252 = vmatmul.bf16.gmra.mxu0 %v140
  %v253 = vpop.f32.mrf.mxu0
  %v254 = vadd.f32 0.0, %v253
  %v255 = vpop.f32.mrf.mxu0
  %v256 = vadd.f32 0.0, %v255
  %257 = vmatmul.bf16.gmra.mxu0 %v143
  %v258 = vpop.f32.mrf.mxu0
  %v259 = vadd.f32 0.0, %v258
  %v260 = vpop.f32.mrf.mxu0
  %v261 = vadd.f32 0.0, %v260
  %262 = vmatmul.bf16.gmra.mxu0 %v146
  %v263 = vpop.f32.mrf.mxu0
  %v264 = vadd.f32 0.0, %v263
  %v265 = vpop.f32.mrf.mxu0
  %v266 = vadd.f32 0.0, %v265
  %267 = vmatmul.bf16.gmra.mxu0 %v149
  %v268 = vpop.f32.mrf.mxu0
  %v269 = vadd.f32 0.0, %v268
  %v270 = vpop.f32.mrf.mxu0
  %v271 = vadd.f32 0.0, %v270
  %272 = vmatmul.bf16.gmra.mxu0 %v152
  %v273 = vpop.f32.mrf.mxu0
  %v274 = vadd.f32 0.0, %v273
  %v275 = vpop.f32.mrf.mxu0
  %v276 = vadd.f32 0.0, %v275
  %277 = vmatmul.bf16.gmra.mxu0 %v155
  %v278 = vpop.f32.mrf.mxu0
  %v279 = vadd.f32 0.0, %v278
  %v280 = vpop.f32.mrf.mxu0
  %281 = vdwg.mxu0
  %v282 = vld [vmem:[%s3] sm:$0x1]
  %v283 = vperm.slane %v282, 0
  %v284 = vadd.f32 %v174, %v283
  %v285 = vadd.f32 %v176, %v283
  %v286 = vadd.f32 %v179, %v283
  %v287 = vadd.f32 %v181, %v283
  %v288 = vadd.f32 %v184, %v283
  %v289 = vadd.f32 %v186, %v283
  %v290 = vadd.f32 %v189, %v283
  %v291 = vadd.f32 %v191, %v283
  %v292 = vadd.f32 %v194, %v283
  %v293 = vadd.f32 %v196, %v283
  %v294 = vadd.f32 %v199, %v283
  %v295 = vadd.f32 %v201, %v283
  %v296 = vadd.f32 %v204, %v283
  %v297 = vadd.f32 %v206, %v283
  %v298 = vadd.f32 %v209, %v283
  %v299 = vadd.f32 %v211, %v283
  %v300 = vadd.f32 %v214, %v283
  %v301 = vadd.f32 %v216, %v283
  %v302 = vadd.f32 %v219, %v283
  %v303 = vadd.f32 %v221, %v283
  %v304 = vadd.f32 %v224, %v283
  %v305 = vadd.f32 %v226, %v283
  %v306 = vadd.f32 %v229, %v283
  %v307 = vadd.f32 %v231, %v283
  %v308 = vadd.f32 %v234, %v283
  %v309 = vadd.f32 %v236, %v283
  %v310 = vadd.f32 %v239, %v283
  %v311 = vadd.f32 %v241, %v283
  %v312 = vadd.f32 %v244, %v283
  %v313 = vadd.f32 %v246, %v283
  %v314 = vadd.f32 %v249, %v283
  %v315 = vadd.f32 %v251, %v283
  %v316 = vadd.f32 %v254, %v283
  %v317 = vadd.f32 %v256, %v283
  %v318 = vadd.f32 %v259, %v283
  %v319 = vadd.f32 %v261, %v283
  %v320 = vadd.f32 %v264, %v283
  %v321 = vadd.f32 %v266, %v283
  %v322 = vadd.f32 %v269, %v283
  %v323 = vadd.f32 %v271, %v283
  %v324 = vadd.f32 %v274, %v283
  %v325 = vadd.f32 %v276, %v283
  %v326 = vadd.f32 %v279, %v283
  %v327 = vmax.f32 %v284, 0.0
  %v328 = vmax.f32 %v285, 0.0
  %v329 = vmax.f32 %v286, 0.0
  %v330 = vmax.f32 %v287, 0.0
  %v331 = vmax.f32 %v288, 0.0
  %v332 = vmax.f32 %v289, 0.0
  %v333 = vmax.f32 %v290, 0.0
  %v334 = vmax.f32 %v291, 0.0
  %v335 = vmax.f32 %v292, 0.0
  %v336 = vmax.f32 %v293, 0.0
  %v337 = vmax.f32 %v294, 0.0
  %v338 = vmax.f32 %v295, 0.0
  %v339 = vmax.f32 %v296, 0.0
  %v340 = vmax.f32 %v297, 0.0
  %v341 = vmax.f32 %v298, 0.0
  %v342 = vmax.f32 %v299, 0.0
  %v343 = vmax.f32 %v300, 0.0
  %v344 = vmax.f32 %v301, 0.0
  %v345 = vmax.f32 %v302, 0.0
  %v346 = vmax.f32 %v303, 0.0
  %v347 = vmax.f32 %v304, 0.0
  %v348 = vmax.f32 %v305, 0.0
  %v349 = vmax.f32 %v306, 0.0
  %v350 = vmax.f32 %v307, 0.0
  %v351 = vmax.f32 %v308, 0.0
  %v352 = vmax.f32 %v309, 0.0
  %v353 = vmax.f32 %v310, 0.0
  %v354 = vmax.f32 %v311, 0.0
  %v355 = vmax.f32 %v312, 0.0
  %v356 = vmax.f32 %v313, 0.0
  %v357 = vmax.f32 %v314, 0.0
  %v358 = vmax.f32 %v315, 0.0
  %v359 = vmax.f32 %v316, 0.0
  %v360 = vmax.f32 %v317, 0.0
  %v361 = vmax.f32 %v318, 0.0
  %v362 = vmax.f32 %v319, 0.0
  %v363 = vmax.f32 %v320, 0.0
  %v364 = vmax.f32 %v321, 0.0
  %v365 = vmax.f32 %v322, 0.0
  %v366 = vmax.f32 %v323, 0.0
  %v367 = vmax.f32 %v324, 0.0
  %v368 = vmax.f32 %v325, 0.0
  %v369 = vmax.f32 %v326, 0.0
  %v370 = vpack.c.bf16 %v328, %v327
  %v371 = vpack.c.bf16 %v330, %v329
  %v372 = vpack.c.bf16 %v332, %v331
  %v373 = vpack.c.bf16 %v334, %v333
  %v374 = vpack.c.bf16 %v336, %v335
  %v375 = vpack.c.bf16 %v338, %v337
  %v376 = vpack.c.bf16 %v340, %v339
  %v377 = vpack.c.bf16 %v342, %v341
  %v378 = vpack.c.bf16 %v344, %v343
  %v379 = vpack.c.bf16 %v346, %v345
  %v380 = vpack.c.bf16 %v348, %v347
  %v381 = vpack.c.bf16 %v350, %v349
  %v382 = vpack.c.bf16 %v352, %v351
  %v383 = vpack.c.bf16 %v354, %v353
  %v384 = vpack.c.bf16 %v356, %v355
  %v385 = vpack.c.bf16 %v358, %v357
  %v386 = vpack.c.bf16 %v360, %v359
  %v387 = vpack.c.bf16 %v362, %v361
  %v388 = vpack.c.bf16 %v364, %v363
  %v389 = vpack.c.bf16 %v366, %v365
  %v390 = vpack.c.bf16 %v368, %v367
  %v391 = vpack.c.bf16 %v369, %v369
  %v392 = vld [vmem:[%s2] sm:$0xf]
  %v393 = vld [vmem:[%s2 + $0x4] sm:$0xf]
  %v394 = vld [vmem:[%s2 + $0x8] sm:$0xf]
  %v395 = vld [vmem:[%s2 + $0xc] sm:$0xf]
  %v396 = vld [vmem:[%s2 + $0x10] sm:$0xf]
  %v397 = vld [vmem:[%s2 + $0x14] sm:$0xf]
  %v398 = vld [vmem:[%s2 + $0x18] sm:$0xf]
  %v399 = vld [vmem:[%s2 + $0x1c] sm:$0xf]
  %v400 = vld [vmem:[%s3 + $0x1] sm:$0x1]
  %v401 = vperm.slane %v400, 0
  %v410 = vunpack.c.l.b16 %v392
  %v411 = vunpack.c.l.b16 %v393
  %v412 = vunpack.c.l.b16 %v394
  %v413 = vunpack.c.l.b16 %v395
  %v414 = vunpack.c.l.b16 %v396
  %v415 = vunpack.c.l.b16 %v397
  %v416 = vunpack.c.l.b16 %v398
  %v417 = vunpack.c.l.b16 %v399
  %v418 = vpack.c.b16 %v411, %v410
  %v419 = vpack.c.b16 %v413, %v412
  %v420 = vpack.c.b16 %v415, %v414
  %v421 = vpack.c.b16 %v417, %v416
  %vm426 = vcmask 523264
  %v428 = vsel %vm426, %v370, 0
  %v431 = vsel %vm426, %v371, 0
  %v434 = vsel %vm426, %v372, 0
  %v437 = vsel %vm426, %v373, 0
  %v440 = vsel %vm426, %v374, 0
  %v443 = vsel %vm426, %v375, 0
  %v446 = vsel %vm426, %v376, 0
  %v449 = vsel %vm426, %v377, 0
  %v452 = vsel %vm426, %v378, 0
  %v455 = vsel %vm426, %v379, 0
  %v458 = vsel %vm426, %v380, 0
  %v461 = vsel %vm426, %v381, 0
  %v464 = vsel %vm426, %v382, 0
  %v467 = vsel %vm426, %v383, 0
  %v470 = vsel %vm426, %v384, 0
  %v473 = vsel %vm426, %v385, 0
  %v476 = vsel %vm426, %v386, 0
  %v479 = vsel %vm426, %v387, 0
  %v482 = vsel %vm426, %v388, 0
  %v485 = vsel %vm426, %v389, 0
  %v488 = vsel %vm426, %v390, 0
  %v491 = vsel %vm426, %v391, 0
  %493 = vmatpush.bf16.msra.mxu0 0
  %494 = vmatpush.bf16.msra.mxu0 0
  %495 = vmatpush.bf16.msra.mxu0 0
  %496 = vmatpush.bf16.msra.mxu0 0
  %497 = vmatpush.bf16.msra.mxu0 %v421
  %498 = vmatpush.bf16.msra.mxu0 %v420
  %499 = vmatpush.bf16.msra.mxu0 %v419
  %500 = vmatpush.bf16.msra.mxu0 %v418
  %501 = vmatmul.bf16.gmra.mxu0 %v428
  %v502 = vpop.f32.mrf.mxu0
  %v503 = vadd.f32 %v401, %v502
  %v504 = vpop.f32.mrf.mxu0
  %v505 = vadd.f32 %v401, %v504
  %506 = vmatmul.bf16.gmra.mxu0 %v431
  %v507 = vpop.f32.mrf.mxu0
  %v508 = vadd.f32 %v401, %v507
  %v509 = vpop.f32.mrf.mxu0
  %v510 = vadd.f32 %v401, %v509
  %511 = vmatmul.bf16.gmra.mxu0 %v434
  %v512 = vpop.f32.mrf.mxu0
  %v513 = vadd.f32 %v401, %v512
  %v514 = vpop.f32.mrf.mxu0
  %v515 = vadd.f32 %v401, %v514
  %516 = vmatmul.bf16.gmra.mxu0 %v437
  %v517 = vpop.f32.mrf.mxu0
  %v518 = vadd.f32 %v401, %v517
  %v519 = vpop.f32.mrf.mxu0
  %v520 = vadd.f32 %v401, %v519
  %521 = vmatmul.bf16.gmra.mxu0 %v440
  %v522 = vpop.f32.mrf.mxu0
  %v523 = vadd.f32 %v401, %v522
  %v524 = vpop.f32.mrf.mxu0
  %v525 = vadd.f32 %v401, %v524
  %526 = vmatmul.bf16.gmra.mxu0 %v443
  %v527 = vpop.f32.mrf.mxu0
  %v528 = vadd.f32 %v401, %v527
  %v529 = vpop.f32.mrf.mxu0
  %v530 = vadd.f32 %v401, %v529
  %531 = vmatmul.bf16.gmra.mxu0 %v446
  %v532 = vpop.f32.mrf.mxu0
  %v533 = vadd.f32 %v401, %v532
  %v534 = vpop.f32.mrf.mxu0
  %v535 = vadd.f32 %v401, %v534
  %536 = vmatmul.bf16.gmra.mxu0 %v449
  %v537 = vpop.f32.mrf.mxu0
  %v538 = vadd.f32 %v401, %v537
  %v539 = vpop.f32.mrf.mxu0
  %v540 = vadd.f32 %v401, %v539
  %541 = vmatmul.bf16.gmra.mxu0 %v452
  %v542 = vpop.f32.mrf.mxu0
  %v543 = vadd.f32 %v401, %v542
  %v544 = vpop.f32.mrf.mxu0
  %v545 = vadd.f32 %v401, %v544
  %546 = vmatmul.bf16.gmra.mxu0 %v455
  %v547 = vpop.f32.mrf.mxu0
  %v548 = vadd.f32 %v401, %v547
  %v549 = vpop.f32.mrf.mxu0
  %v550 = vadd.f32 %v401, %v549
  %551 = vmatmul.bf16.gmra.mxu0 %v458
  %v552 = vpop.f32.mrf.mxu0
  %v553 = vadd.f32 %v401, %v552
  %v554 = vpop.f32.mrf.mxu0
  %v555 = vadd.f32 %v401, %v554
  %556 = vmatmul.bf16.gmra.mxu0 %v461
  %v557 = vpop.f32.mrf.mxu0
  %v558 = vadd.f32 %v401, %v557
  %v559 = vpop.f32.mrf.mxu0
  %v560 = vadd.f32 %v401, %v559
  %561 = vmatmul.bf16.gmra.mxu0 %v464
  %v562 = vpop.f32.mrf.mxu0
  %v563 = vadd.f32 %v401, %v562
  %v564 = vpop.f32.mrf.mxu0
  %v565 = vadd.f32 %v401, %v564
  %566 = vmatmul.bf16.gmra.mxu0 %v467
  %v567 = vpop.f32.mrf.mxu0
  %v568 = vadd.f32 %v401, %v567
  %v569 = vpop.f32.mrf.mxu0
  %v570 = vadd.f32 %v401, %v569
  %571 = vmatmul.bf16.gmra.mxu0 %v470
  %v572 = vpop.f32.mrf.mxu0
  %v573 = vadd.f32 %v401, %v572
  %v574 = vpop.f32.mrf.mxu0
  %v575 = vadd.f32 %v401, %v574
  %576 = vmatmul.bf16.gmra.mxu0 %v473
  %v577 = vpop.f32.mrf.mxu0
  %v578 = vadd.f32 %v401, %v577
  %v579 = vpop.f32.mrf.mxu0
  %v580 = vadd.f32 %v401, %v579
  %581 = vmatmul.bf16.gmra.mxu0 %v476
  %v582 = vpop.f32.mrf.mxu0
  %v583 = vadd.f32 %v401, %v582
  %v584 = vpop.f32.mrf.mxu0
  %v585 = vadd.f32 %v401, %v584
  %586 = vmatmul.bf16.gmra.mxu0 %v479
  %v587 = vpop.f32.mrf.mxu0
  %v588 = vadd.f32 %v401, %v587
  %v589 = vpop.f32.mrf.mxu0
  %v590 = vadd.f32 %v401, %v589
  %591 = vmatmul.bf16.gmra.mxu0 %v482
  %v592 = vpop.f32.mrf.mxu0
  %v593 = vadd.f32 %v401, %v592
  %v594 = vpop.f32.mrf.mxu0
  %v595 = vadd.f32 %v401, %v594
  %596 = vmatmul.bf16.gmra.mxu0 %v485
  %v597 = vpop.f32.mrf.mxu0
  %v598 = vadd.f32 %v401, %v597
  %v599 = vpop.f32.mrf.mxu0
  %v600 = vadd.f32 %v401, %v599
  %601 = vmatmul.bf16.gmra.mxu0 %v488
  %v602 = vpop.f32.mrf.mxu0
  %v603 = vadd.f32 %v401, %v602
  %v604 = vpop.f32.mrf.mxu0
  %v605 = vadd.f32 %v401, %v604
  %606 = vmatmul.bf16.gmra.mxu0 %v491
  %v607 = vpop.f32.mrf.mxu0
  %v608 = vadd.f32 %v401, %v607
  %v609 = vpop.f32.mrf.mxu0
  %610 = vdwg.mxu0
  %v611 = vmax.f32 %v503, 0.0
  %v612 = vmax.f32 %v505, 0.0
  %v613 = vmax.f32 %v508, 0.0
  %v614 = vmax.f32 %v510, 0.0
  %v615 = vmax.f32 %v513, 0.0
  %v616 = vmax.f32 %v515, 0.0
  %v617 = vmax.f32 %v518, 0.0
  %v618 = vmax.f32 %v520, 0.0
  %v619 = vmax.f32 %v523, 0.0
  %v620 = vmax.f32 %v525, 0.0
  %v621 = vmax.f32 %v528, 0.0
  %v622 = vmax.f32 %v530, 0.0
  %v623 = vmax.f32 %v533, 0.0
  %v624 = vmax.f32 %v535, 0.0
  %v625 = vmax.f32 %v538, 0.0
  %v626 = vmax.f32 %v540, 0.0
  %v627 = vmax.f32 %v543, 0.0
  %v628 = vmax.f32 %v545, 0.0
  %v629 = vmax.f32 %v548, 0.0
  %v630 = vmax.f32 %v550, 0.0
  %v631 = vmax.f32 %v553, 0.0
  %v632 = vmax.f32 %v555, 0.0
  %v633 = vmax.f32 %v558, 0.0
  %v634 = vmax.f32 %v560, 0.0
  %v635 = vmax.f32 %v563, 0.0
  %v636 = vmax.f32 %v565, 0.0
  %v637 = vmax.f32 %v568, 0.0
  %v638 = vmax.f32 %v570, 0.0
  %v639 = vmax.f32 %v573, 0.0
  %v640 = vmax.f32 %v575, 0.0
  %v641 = vmax.f32 %v578, 0.0
  %v642 = vmax.f32 %v580, 0.0
  %v643 = vmax.f32 %v583, 0.0
  %v644 = vmax.f32 %v585, 0.0
  %v645 = vmax.f32 %v588, 0.0
  %v646 = vmax.f32 %v590, 0.0
  %v647 = vmax.f32 %v593, 0.0
  %v648 = vmax.f32 %v595, 0.0
  %v649 = vmax.f32 %v598, 0.0
  %v650 = vmax.f32 %v600, 0.0
  %v651 = vmax.f32 %v603, 0.0
  %v652 = vmax.f32 %v605, 0.0
  %v653 = vmax.f32 %v608, 0.0
  %v654 = vpack.c.bf16 %v612, %v611
  %v655 = vpack.c.bf16 %v614, %v613
  %v656 = vpack.c.bf16 %v616, %v615
  %v657 = vpack.c.bf16 %v618, %v617
  %v658 = vpack.c.bf16 %v620, %v619
  %v659 = vpack.c.bf16 %v622, %v621
  %v660 = vpack.c.bf16 %v624, %v623
  %v661 = vpack.c.bf16 %v626, %v625
  %v662 = vpack.c.bf16 %v628, %v627
  %v663 = vpack.c.bf16 %v630, %v629
  %v664 = vpack.c.bf16 %v632, %v631
  %v665 = vpack.c.bf16 %v634, %v633
  %v666 = vpack.c.bf16 %v636, %v635
  %v667 = vpack.c.bf16 %v638, %v637
  %v668 = vpack.c.bf16 %v640, %v639
  %v669 = vpack.c.bf16 %v642, %v641
  %v670 = vpack.c.bf16 %v644, %v643
  %v671 = vpack.c.bf16 %v646, %v645
  %v672 = vpack.c.bf16 %v648, %v647
  %v673 = vpack.c.bf16 %v650, %v649
  %v674 = vpack.c.bf16 %v652, %v651
  %v675 = vpack.c.bf16 %v653, %v653
  %v676 = vld [vmem:[%s2 + $0x20] sm:$0xf]
  %v677 = vld [vmem:[%s2 + $0x24] sm:$0xf]
  %v678 = vld [vmem:[%s2 + $0x28] sm:$0xf]
  %v679 = vld [vmem:[%s2 + $0x2c] sm:$0xf]
  %v680 = vld [vmem:[%s2 + $0x30] sm:$0xf]
  %v681 = vld [vmem:[%s2 + $0x34] sm:$0xf]
  %v682 = vld [vmem:[%s2 + $0x38] sm:$0xf]
  %v683 = vld [vmem:[%s2 + $0x3c] sm:$0xf]
  %v684 = vld [vmem:[%s3 + $0x2] sm:$0x1]
  %v685 = vperm.slane %v684, 0
  %v694 = vunpack.c.l.b16 %v676
  %v695 = vunpack.c.l.b16 %v677
  %v696 = vunpack.c.l.b16 %v678
  %v697 = vunpack.c.l.b16 %v679
  %v698 = vunpack.c.l.b16 %v680
  %v699 = vunpack.c.l.b16 %v681
  %v700 = vunpack.c.l.b16 %v682
  %v701 = vunpack.c.l.b16 %v683
  %v702 = vpack.c.b16 %v695, %v694
  %v703 = vpack.c.b16 %v697, %v696
  %v704 = vpack.c.b16 %v699, %v698
  %v705 = vpack.c.b16 %v701, %v700
  %v711 = vsel %vm426, %v654, 0
  %v714 = vsel %vm426, %v655, 0
  %v717 = vsel %vm426, %v656, 0
  %v720 = vsel %vm426, %v657, 0
  %v723 = vsel %vm426, %v658, 0
  %v726 = vsel %vm426, %v659, 0
  %v729 = vsel %vm426, %v660, 0
  %v732 = vsel %vm426, %v661, 0
  %v735 = vsel %vm426, %v662, 0
  %v738 = vsel %vm426, %v663, 0
  %v741 = vsel %vm426, %v664, 0
  %v744 = vsel %vm426, %v665, 0
  %v747 = vsel %vm426, %v666, 0
  %v750 = vsel %vm426, %v667, 0
  %v753 = vsel %vm426, %v668, 0
  %v756 = vsel %vm426, %v669, 0
  %v759 = vsel %vm426, %v670, 0
  %v762 = vsel %vm426, %v671, 0
  %v765 = vsel %vm426, %v672, 0
  %v768 = vsel %vm426, %v673, 0
  %v771 = vsel %vm426, %v674, 0
  %v774 = vsel %vm426, %v675, 0
  %776 = vmatpush.bf16.msra.mxu0 0
  %777 = vmatpush.bf16.msra.mxu0 0
  %778 = vmatpush.bf16.msra.mxu0 0
  %779 = vmatpush.bf16.msra.mxu0 0
  %780 = vmatpush.bf16.msra.mxu0 %v705
  %781 = vmatpush.bf16.msra.mxu0 %v704
  %782 = vmatpush.bf16.msra.mxu0 %v703
  %783 = vmatpush.bf16.msra.mxu0 %v702
  %784 = vmatmul.bf16.gmra.mxu0 %v711
  %v785 = vpop.f32.mrf.mxu0
  %v786 = vadd.f32 %v685, %v785
  %v787 = vpop.f32.mrf.mxu0
  %v788 = vadd.f32 %v685, %v787
  %789 = vmatmul.bf16.gmra.mxu0 %v714
  %v790 = vpop.f32.mrf.mxu0
  %v791 = vadd.f32 %v685, %v790
  %v792 = vpop.f32.mrf.mxu0
  %v793 = vadd.f32 %v685, %v792
  %794 = vmatmul.bf16.gmra.mxu0 %v717
  %v795 = vpop.f32.mrf.mxu0
  %v796 = vadd.f32 %v685, %v795
  %v797 = vpop.f32.mrf.mxu0
  %v798 = vadd.f32 %v685, %v797
  %799 = vmatmul.bf16.gmra.mxu0 %v720
  %v800 = vpop.f32.mrf.mxu0
  %v801 = vadd.f32 %v685, %v800
  %v802 = vpop.f32.mrf.mxu0
  %v803 = vadd.f32 %v685, %v802
  %804 = vmatmul.bf16.gmra.mxu0 %v723
  %v805 = vpop.f32.mrf.mxu0
  %v806 = vadd.f32 %v685, %v805
  %v807 = vpop.f32.mrf.mxu0
  %v808 = vadd.f32 %v685, %v807
  %809 = vmatmul.bf16.gmra.mxu0 %v726
  %v810 = vpop.f32.mrf.mxu0
  %v811 = vadd.f32 %v685, %v810
  %v812 = vpop.f32.mrf.mxu0
  %v813 = vadd.f32 %v685, %v812
  %814 = vmatmul.bf16.gmra.mxu0 %v729
  %v815 = vpop.f32.mrf.mxu0
  %v816 = vadd.f32 %v685, %v815
  %v817 = vpop.f32.mrf.mxu0
  %v818 = vadd.f32 %v685, %v817
  %819 = vmatmul.bf16.gmra.mxu0 %v732
  %v820 = vpop.f32.mrf.mxu0
  %v821 = vadd.f32 %v685, %v820
  %v822 = vpop.f32.mrf.mxu0
  %v823 = vadd.f32 %v685, %v822
  %824 = vmatmul.bf16.gmra.mxu0 %v735
  %v825 = vpop.f32.mrf.mxu0
  %v826 = vadd.f32 %v685, %v825
  %v827 = vpop.f32.mrf.mxu0
  %v828 = vadd.f32 %v685, %v827
  %829 = vmatmul.bf16.gmra.mxu0 %v738
  %v830 = vpop.f32.mrf.mxu0
  %v831 = vadd.f32 %v685, %v830
  %v832 = vpop.f32.mrf.mxu0
  %v833 = vadd.f32 %v685, %v832
  %834 = vmatmul.bf16.gmra.mxu0 %v741
  %v835 = vpop.f32.mrf.mxu0
  %v836 = vadd.f32 %v685, %v835
  %v837 = vpop.f32.mrf.mxu0
  %v838 = vadd.f32 %v685, %v837
  %839 = vmatmul.bf16.gmra.mxu0 %v744
  %v840 = vpop.f32.mrf.mxu0
  %v841 = vadd.f32 %v685, %v840
  %v842 = vpop.f32.mrf.mxu0
  %v843 = vadd.f32 %v685, %v842
  %844 = vmatmul.bf16.gmra.mxu0 %v747
  %v845 = vpop.f32.mrf.mxu0
  %v846 = vadd.f32 %v685, %v845
  %v847 = vpop.f32.mrf.mxu0
  %v848 = vadd.f32 %v685, %v847
  %849 = vmatmul.bf16.gmra.mxu0 %v750
  %v850 = vpop.f32.mrf.mxu0
  %v851 = vadd.f32 %v685, %v850
  %v852 = vpop.f32.mrf.mxu0
  %v853 = vadd.f32 %v685, %v852
  %854 = vmatmul.bf16.gmra.mxu0 %v753
  %v855 = vpop.f32.mrf.mxu0
  %v856 = vadd.f32 %v685, %v855
  %v857 = vpop.f32.mrf.mxu0
  %v858 = vadd.f32 %v685, %v857
  %859 = vmatmul.bf16.gmra.mxu0 %v756
  %v860 = vpop.f32.mrf.mxu0
  %v861 = vadd.f32 %v685, %v860
  %v862 = vpop.f32.mrf.mxu0
  %v863 = vadd.f32 %v685, %v862
  %864 = vmatmul.bf16.gmra.mxu0 %v759
  %v865 = vpop.f32.mrf.mxu0
  %v866 = vadd.f32 %v685, %v865
  %v867 = vpop.f32.mrf.mxu0
  %v868 = vadd.f32 %v685, %v867
  %869 = vmatmul.bf16.gmra.mxu0 %v762
  %v870 = vpop.f32.mrf.mxu0
  %v871 = vadd.f32 %v685, %v870
  %v872 = vpop.f32.mrf.mxu0
  %v873 = vadd.f32 %v685, %v872
  %874 = vmatmul.bf16.gmra.mxu0 %v765
  %v875 = vpop.f32.mrf.mxu0
  %v876 = vadd.f32 %v685, %v875
  %v877 = vpop.f32.mrf.mxu0
  %v878 = vadd.f32 %v685, %v877
  %879 = vmatmul.bf16.gmra.mxu0 %v768
  %v880 = vpop.f32.mrf.mxu0
  %v881 = vadd.f32 %v685, %v880
  %v882 = vpop.f32.mrf.mxu0
  %v883 = vadd.f32 %v685, %v882
  %884 = vmatmul.bf16.gmra.mxu0 %v771
  %v885 = vpop.f32.mrf.mxu0
  %v886 = vadd.f32 %v685, %v885
  %v887 = vpop.f32.mrf.mxu0
  %v888 = vadd.f32 %v685, %v887
  %889 = vmatmul.bf16.gmra.mxu0 %v774
  %v890 = vpop.f32.mrf.mxu0
  %v891 = vadd.f32 %v685, %v890
  %v892 = vpop.f32.mrf.mxu0
  %893 = vdwg.mxu0
  %v894 = vmax.f32 %v786, 0.0
  %v895 = vmax.f32 %v788, 0.0
  %v896 = vmax.f32 %v791, 0.0
  %v897 = vmax.f32 %v793, 0.0
  %v898 = vmax.f32 %v796, 0.0
  %v899 = vmax.f32 %v798, 0.0
  %v900 = vmax.f32 %v801, 0.0
  %v901 = vmax.f32 %v803, 0.0
  %v902 = vmax.f32 %v806, 0.0
  %v903 = vmax.f32 %v808, 0.0
  %v904 = vmax.f32 %v811, 0.0
  %v905 = vmax.f32 %v813, 0.0
  %v906 = vmax.f32 %v816, 0.0
  %v907 = vmax.f32 %v818, 0.0
  %v908 = vmax.f32 %v821, 0.0
  %v909 = vmax.f32 %v823, 0.0
  %v910 = vmax.f32 %v826, 0.0
  %v911 = vmax.f32 %v828, 0.0
  %v912 = vmax.f32 %v831, 0.0
  %v913 = vmax.f32 %v833, 0.0
  %v914 = vmax.f32 %v836, 0.0
  %v915 = vmax.f32 %v838, 0.0
  %v916 = vmax.f32 %v841, 0.0
  %v917 = vmax.f32 %v843, 0.0
  %v918 = vmax.f32 %v846, 0.0
  %v919 = vmax.f32 %v848, 0.0
  %v920 = vmax.f32 %v851, 0.0
  %v921 = vmax.f32 %v853, 0.0
  %v922 = vmax.f32 %v856, 0.0
  %v923 = vmax.f32 %v858, 0.0
  %v924 = vmax.f32 %v861, 0.0
  %v925 = vmax.f32 %v863, 0.0
  %v926 = vmax.f32 %v866, 0.0
  %v927 = vmax.f32 %v868, 0.0
  %v928 = vmax.f32 %v871, 0.0
  %v929 = vmax.f32 %v873, 0.0
  %v930 = vmax.f32 %v876, 0.0
  %v931 = vmax.f32 %v878, 0.0
  %v932 = vmax.f32 %v881, 0.0
  %v933 = vmax.f32 %v883, 0.0
  %v934 = vmax.f32 %v886, 0.0
  %v935 = vmax.f32 %v888, 0.0
  %v936 = vmax.f32 %v891, 0.0
  %v937 = vpack.c.bf16 %v895, %v894
  %v938 = vpack.c.bf16 %v897, %v896
  %v939 = vpack.c.bf16 %v899, %v898
  %v940 = vpack.c.bf16 %v901, %v900
  %v941 = vpack.c.bf16 %v903, %v902
  %v942 = vpack.c.bf16 %v905, %v904
  %v943 = vpack.c.bf16 %v907, %v906
  %v944 = vpack.c.bf16 %v909, %v908
  %v945 = vpack.c.bf16 %v911, %v910
  %v946 = vpack.c.bf16 %v913, %v912
  %v947 = vpack.c.bf16 %v915, %v914
  %v948 = vpack.c.bf16 %v917, %v916
  %v949 = vpack.c.bf16 %v919, %v918
  %v950 = vpack.c.bf16 %v921, %v920
  %v951 = vpack.c.bf16 %v923, %v922
  %v952 = vpack.c.bf16 %v925, %v924
  %v953 = vpack.c.bf16 %v927, %v926
  %v954 = vpack.c.bf16 %v929, %v928
  %v955 = vpack.c.bf16 %v931, %v930
  %v956 = vpack.c.bf16 %v933, %v932
  %v957 = vpack.c.bf16 %v935, %v934
  %v958 = vpack.c.bf16 %v936, %v936
  %v959 = vld [vmem:[%s2 + $0x40] sm:$0xf]
  %v960 = vld [vmem:[%s2 + $0x44] sm:$0xf]
  %v961 = vld [vmem:[%s2 + $0x48] sm:$0xf]
  %v962 = vld [vmem:[%s2 + $0x4c] sm:$0xf]
  %v963 = vld [vmem:[%s2 + $0x50] sm:$0xf]
  %v964 = vld [vmem:[%s2 + $0x54] sm:$0xf]
  %v965 = vld [vmem:[%s2 + $0x58] sm:$0xf]
  %v966 = vld [vmem:[%s2 + $0x5c] sm:$0xf]
  %v967 = vld [vmem:[%s3 + $0x3] sm:$0x1]
  %v968 = vperm.slane %v967, 0
  %v977 = vunpack.c.l.b16 %v959
  %v978 = vunpack.c.l.b16 %v960
  %v979 = vunpack.c.l.b16 %v961
  %v980 = vunpack.c.l.b16 %v962
  %v981 = vunpack.c.l.b16 %v963
  %v982 = vunpack.c.l.b16 %v964
  %v983 = vunpack.c.l.b16 %v965
  %v984 = vunpack.c.l.b16 %v966
  %v985 = vpack.c.b16 %v978, %v977
  %v986 = vpack.c.b16 %v980, %v979
  %v987 = vpack.c.b16 %v982, %v981
  %v988 = vpack.c.b16 %v984, %v983
  %v994 = vsel %vm426, %v937, 0
  %v997 = vsel %vm426, %v938, 0
  %v1000 = vsel %vm426, %v939, 0
  %v1003 = vsel %vm426, %v940, 0
  %v1006 = vsel %vm426, %v941, 0
  %v1009 = vsel %vm426, %v942, 0
  %v1012 = vsel %vm426, %v943, 0
  %v1015 = vsel %vm426, %v944, 0
  %v1018 = vsel %vm426, %v945, 0
  %v1021 = vsel %vm426, %v946, 0
  %v1024 = vsel %vm426, %v947, 0
  %v1027 = vsel %vm426, %v948, 0
  %v1030 = vsel %vm426, %v949, 0
  %v1033 = vsel %vm426, %v950, 0
  %v1036 = vsel %vm426, %v951, 0
  %v1039 = vsel %vm426, %v952, 0
  %v1042 = vsel %vm426, %v953, 0
  %v1045 = vsel %vm426, %v954, 0
  %v1048 = vsel %vm426, %v955, 0
  %v1051 = vsel %vm426, %v956, 0
  %v1054 = vsel %vm426, %v957, 0
  %v1057 = vsel %vm426, %v958, 0
  %1059 = vmatpush.bf16.msra.mxu0 0
  %1060 = vmatpush.bf16.msra.mxu0 0
  %1061 = vmatpush.bf16.msra.mxu0 0
  %1062 = vmatpush.bf16.msra.mxu0 0
  %1063 = vmatpush.bf16.msra.mxu0 %v988
  %1064 = vmatpush.bf16.msra.mxu0 %v987
  %1065 = vmatpush.bf16.msra.mxu0 %v986
  %1066 = vmatpush.bf16.msra.mxu0 %v985
  %1067 = vmatmul.bf16.gmra.mxu0 %v994
  %v1068 = vpop.f32.mrf.mxu0
  %v1069 = vadd.f32 %v968, %v1068
  %v1070 = vpop.f32.mrf.mxu0
  %v1071 = vadd.f32 %v968, %v1070
  %1072 = vmatmul.bf16.gmra.mxu0 %v997
  %v1073 = vpop.f32.mrf.mxu0
  %v1074 = vadd.f32 %v968, %v1073
  %v1075 = vpop.f32.mrf.mxu0
  %v1076 = vadd.f32 %v968, %v1075
  %1077 = vmatmul.bf16.gmra.mxu0 %v1000
  %v1078 = vpop.f32.mrf.mxu0
  %v1079 = vadd.f32 %v968, %v1078
  %v1080 = vpop.f32.mrf.mxu0
  %v1081 = vadd.f32 %v968, %v1080
  %1082 = vmatmul.bf16.gmra.mxu0 %v1003
  %v1083 = vpop.f32.mrf.mxu0
  %v1084 = vadd.f32 %v968, %v1083
  %v1085 = vpop.f32.mrf.mxu0
  %v1086 = vadd.f32 %v968, %v1085
  %1087 = vmatmul.bf16.gmra.mxu0 %v1006
  %v1088 = vpop.f32.mrf.mxu0
  %v1089 = vadd.f32 %v968, %v1088
  %v1090 = vpop.f32.mrf.mxu0
  %v1091 = vadd.f32 %v968, %v1090
  %1092 = vmatmul.bf16.gmra.mxu0 %v1009
  %v1093 = vpop.f32.mrf.mxu0
  %v1094 = vadd.f32 %v968, %v1093
  %v1095 = vpop.f32.mrf.mxu0
  %v1096 = vadd.f32 %v968, %v1095
  %1097 = vmatmul.bf16.gmra.mxu0 %v1012
  %v1098 = vpop.f32.mrf.mxu0
  %v1099 = vadd.f32 %v968, %v1098
  %v1100 = vpop.f32.mrf.mxu0
  %v1101 = vadd.f32 %v968, %v1100
  %1102 = vmatmul.bf16.gmra.mxu0 %v1015
  %v1103 = vpop.f32.mrf.mxu0
  %v1104 = vadd.f32 %v968, %v1103
  %v1105 = vpop.f32.mrf.mxu0
  %v1106 = vadd.f32 %v968, %v1105
  %1107 = vmatmul.bf16.gmra.mxu0 %v1018
  %v1108 = vpop.f32.mrf.mxu0
  %v1109 = vadd.f32 %v968, %v1108
  %v1110 = vpop.f32.mrf.mxu0
  %v1111 = vadd.f32 %v968, %v1110
  %1112 = vmatmul.bf16.gmra.mxu0 %v1021
  %v1113 = vpop.f32.mrf.mxu0
  %v1114 = vadd.f32 %v968, %v1113
  %v1115 = vpop.f32.mrf.mxu0
  %v1116 = vadd.f32 %v968, %v1115
  %1117 = vmatmul.bf16.gmra.mxu0 %v1024
  %v1118 = vpop.f32.mrf.mxu0
  %v1119 = vadd.f32 %v968, %v1118
  %v1120 = vpop.f32.mrf.mxu0
  %v1121 = vadd.f32 %v968, %v1120
  %1122 = vmatmul.bf16.gmra.mxu0 %v1027
  %v1123 = vpop.f32.mrf.mxu0
  %v1124 = vadd.f32 %v968, %v1123
  %v1125 = vpop.f32.mrf.mxu0
  %v1126 = vadd.f32 %v968, %v1125
  %1127 = vmatmul.bf16.gmra.mxu0 %v1030
  %v1128 = vpop.f32.mrf.mxu0
  %v1129 = vadd.f32 %v968, %v1128
  %v1130 = vpop.f32.mrf.mxu0
  %v1131 = vadd.f32 %v968, %v1130
  %1132 = vmatmul.bf16.gmra.mxu0 %v1033
  %v1133 = vpop.f32.mrf.mxu0
  %v1134 = vadd.f32 %v968, %v1133
  %v1135 = vpop.f32.mrf.mxu0
  %v1136 = vadd.f32 %v968, %v1135
  %1137 = vmatmul.bf16.gmra.mxu0 %v1036
  %v1138 = vpop.f32.mrf.mxu0
  %v1139 = vadd.f32 %v968, %v1138
  %v1140 = vpop.f32.mrf.mxu0
  %v1141 = vadd.f32 %v968, %v1140
  %1142 = vmatmul.bf16.gmra.mxu0 %v1039
  %v1143 = vpop.f32.mrf.mxu0
  %v1144 = vadd.f32 %v968, %v1143
  %v1145 = vpop.f32.mrf.mxu0
  %v1146 = vadd.f32 %v968, %v1145
  %1147 = vmatmul.bf16.gmra.mxu0 %v1042
  %v1148 = vpop.f32.mrf.mxu0
  %v1149 = vadd.f32 %v968, %v1148
  %v1150 = vpop.f32.mrf.mxu0
  %v1151 = vadd.f32 %v968, %v1150
  %1152 = vmatmul.bf16.gmra.mxu0 %v1045
  %v1153 = vpop.f32.mrf.mxu0
  %v1154 = vadd.f32 %v968, %v1153
  %v1155 = vpop.f32.mrf.mxu0
  %v1156 = vadd.f32 %v968, %v1155
  %1157 = vmatmul.bf16.gmra.mxu0 %v1048
  %v1158 = vpop.f32.mrf.mxu0
  %v1159 = vadd.f32 %v968, %v1158
  %v1160 = vpop.f32.mrf.mxu0
  %v1161 = vadd.f32 %v968, %v1160
  %1162 = vmatmul.bf16.gmra.mxu0 %v1051
  %v1163 = vpop.f32.mrf.mxu0
  %v1164 = vadd.f32 %v968, %v1163
  %v1165 = vpop.f32.mrf.mxu0
  %v1166 = vadd.f32 %v968, %v1165
  %1167 = vmatmul.bf16.gmra.mxu0 %v1054
  %v1168 = vpop.f32.mrf.mxu0
  %v1169 = vadd.f32 %v968, %v1168
  %v1170 = vpop.f32.mrf.mxu0
  %v1171 = vadd.f32 %v968, %v1170
  %1172 = vmatmul.bf16.gmra.mxu0 %v1057
  %v1173 = vpop.f32.mrf.mxu0
  %v1174 = vadd.f32 %v968, %v1173
  %v1175 = vpop.f32.mrf.mxu0
  %1176 = vdwg.mxu0
  %v1177 = vmax.f32 %v1069, 0.0
  %v1178 = vmax.f32 %v1071, 0.0
  %v1179 = vmax.f32 %v1074, 0.0
  %v1180 = vmax.f32 %v1076, 0.0
  %v1181 = vmax.f32 %v1079, 0.0
  %v1182 = vmax.f32 %v1081, 0.0
  %v1183 = vmax.f32 %v1084, 0.0
  %v1184 = vmax.f32 %v1086, 0.0
  %v1185 = vmax.f32 %v1089, 0.0
  %v1186 = vmax.f32 %v1091, 0.0
  %v1187 = vmax.f32 %v1094, 0.0
  %v1188 = vmax.f32 %v1096, 0.0
  %v1189 = vmax.f32 %v1099, 0.0
  %v1190 = vmax.f32 %v1101, 0.0
  %v1191 = vmax.f32 %v1104, 0.0
  %v1192 = vmax.f32 %v1106, 0.0
  %v1193 = vmax.f32 %v1109, 0.0
  %v1194 = vmax.f32 %v1111, 0.0
  %v1195 = vmax.f32 %v1114, 0.0
  %v1196 = vmax.f32 %v1116, 0.0
  %v1197 = vmax.f32 %v1119, 0.0
  %v1198 = vmax.f32 %v1121, 0.0
  %v1199 = vmax.f32 %v1124, 0.0
  %v1200 = vmax.f32 %v1126, 0.0
  %v1201 = vmax.f32 %v1129, 0.0
  %v1202 = vmax.f32 %v1131, 0.0
  %v1203 = vmax.f32 %v1134, 0.0
  %v1204 = vmax.f32 %v1136, 0.0
  %v1205 = vmax.f32 %v1139, 0.0
  %v1206 = vmax.f32 %v1141, 0.0
  %v1207 = vmax.f32 %v1144, 0.0
  %v1208 = vmax.f32 %v1146, 0.0
  %v1209 = vmax.f32 %v1149, 0.0
  %v1210 = vmax.f32 %v1151, 0.0
  %v1211 = vmax.f32 %v1154, 0.0
  %v1212 = vmax.f32 %v1156, 0.0
  %v1213 = vmax.f32 %v1159, 0.0
  %v1214 = vmax.f32 %v1161, 0.0
  %v1215 = vmax.f32 %v1164, 0.0
  %v1216 = vmax.f32 %v1166, 0.0
  %v1217 = vmax.f32 %v1169, 0.0
  %v1218 = vmax.f32 %v1171, 0.0
  %v1219 = vmax.f32 %v1174, 0.0
  %v1220 = vpack.c.bf16 %v1178, %v1177
  %v1221 = vpack.c.bf16 %v1180, %v1179
  %v1222 = vpack.c.bf16 %v1182, %v1181
  %v1223 = vpack.c.bf16 %v1184, %v1183
  %v1224 = vpack.c.bf16 %v1186, %v1185
  %v1225 = vpack.c.bf16 %v1188, %v1187
  %v1226 = vpack.c.bf16 %v1190, %v1189
  %v1227 = vpack.c.bf16 %v1192, %v1191
  %v1228 = vpack.c.bf16 %v1194, %v1193
  %v1229 = vpack.c.bf16 %v1196, %v1195
  %v1230 = vpack.c.bf16 %v1198, %v1197
  %v1231 = vpack.c.bf16 %v1200, %v1199
  %v1232 = vpack.c.bf16 %v1202, %v1201
  %v1233 = vpack.c.bf16 %v1204, %v1203
  %v1234 = vpack.c.bf16 %v1206, %v1205
  %v1235 = vpack.c.bf16 %v1208, %v1207
  %v1236 = vpack.c.bf16 %v1210, %v1209
  %v1237 = vpack.c.bf16 %v1212, %v1211
  %v1238 = vpack.c.bf16 %v1214, %v1213
  %v1239 = vpack.c.bf16 %v1216, %v1215
  %v1240 = vpack.c.bf16 %v1218, %v1217
  %v1241 = vpack.c.bf16 %v1219, %v1219
  %v1242 = vld [vmem:[%s2 + $0x60] sm:$0xf]
  %v1243 = vld [vmem:[%s2 + $0x64] sm:$0xf]
  %v1244 = vld [vmem:[%s2 + $0x68] sm:$0xf]
  %v1245 = vld [vmem:[%s2 + $0x6c] sm:$0xf]
  %v1246 = vld [vmem:[%s2 + $0x70] sm:$0xf]
  %v1247 = vld [vmem:[%s2 + $0x74] sm:$0xf]
  %v1248 = vld [vmem:[%s2 + $0x78] sm:$0xf]
  %v1249 = vld [vmem:[%s2 + $0x7c] sm:$0xf]
  %v1250 = vld [vmem:[%s3 + $0x4] sm:$0x1]
  %v1251 = vperm.slane %v1250, 0
  %v1260 = vunpack.c.l.b16 %v1242
  %v1261 = vunpack.c.l.b16 %v1243
  %v1262 = vunpack.c.l.b16 %v1244
  %v1263 = vunpack.c.l.b16 %v1245
  %v1264 = vunpack.c.l.b16 %v1246
  %v1265 = vunpack.c.l.b16 %v1247
  %v1266 = vunpack.c.l.b16 %v1248
  %v1267 = vunpack.c.l.b16 %v1249
  %v1268 = vpack.c.b16 %v1261, %v1260
  %v1269 = vpack.c.b16 %v1263, %v1262
  %v1270 = vpack.c.b16 %v1265, %v1264
  %v1271 = vpack.c.b16 %v1267, %v1266
  %v1277 = vsel %vm426, %v1220, 0
  %v1280 = vsel %vm426, %v1221, 0
  %v1283 = vsel %vm426, %v1222, 0
  %v1286 = vsel %vm426, %v1223, 0
  %v1289 = vsel %vm426, %v1224, 0
  %v1292 = vsel %vm426, %v1225, 0
  %v1295 = vsel %vm426, %v1226, 0
  %v1298 = vsel %vm426, %v1227, 0
  %v1301 = vsel %vm426, %v1228, 0
  %v1304 = vsel %vm426, %v1229, 0
  %v1307 = vsel %vm426, %v1230, 0
  %v1310 = vsel %vm426, %v1231, 0
  %v1313 = vsel %vm426, %v1232, 0
  %v1316 = vsel %vm426, %v1233, 0
  %v1319 = vsel %vm426, %v1234, 0
  %v1322 = vsel %vm426, %v1235, 0
  %v1325 = vsel %vm426, %v1236, 0
  %v1328 = vsel %vm426, %v1237, 0
  %v1331 = vsel %vm426, %v1238, 0
  %v1334 = vsel %vm426, %v1239, 0
  %v1337 = vsel %vm426, %v1240, 0
  %v1340 = vsel %vm426, %v1241, 0
  %1342 = vmatpush.bf16.msra.mxu0 0
  %1343 = vmatpush.bf16.msra.mxu0 0
  %1344 = vmatpush.bf16.msra.mxu0 0
  %1345 = vmatpush.bf16.msra.mxu0 0
  %1346 = vmatpush.bf16.msra.mxu0 %v1271
  %1347 = vmatpush.bf16.msra.mxu0 %v1270
  %1348 = vmatpush.bf16.msra.mxu0 %v1269
  %1349 = vmatpush.bf16.msra.mxu0 %v1268
  %1350 = vmatmul.bf16.gmra.mxu0 %v1277
  %v1351 = vpop.f32.mrf.mxu0
  %v1352 = vadd.f32 %v1251, %v1351
  %v1353 = vpop.f32.mrf.mxu0
  %v1354 = vadd.f32 %v1251, %v1353
  %1355 = vmatmul.bf16.gmra.mxu0 %v1280
  %v1356 = vpop.f32.mrf.mxu0
  %v1357 = vadd.f32 %v1251, %v1356
  %v1358 = vpop.f32.mrf.mxu0
  %v1359 = vadd.f32 %v1251, %v1358
  %1360 = vmatmul.bf16.gmra.mxu0 %v1283
  %v1361 = vpop.f32.mrf.mxu0
  %v1362 = vadd.f32 %v1251, %v1361
  %v1363 = vpop.f32.mrf.mxu0
  %v1364 = vadd.f32 %v1251, %v1363
  %1365 = vmatmul.bf16.gmra.mxu0 %v1286
  %v1366 = vpop.f32.mrf.mxu0
  %v1367 = vadd.f32 %v1251, %v1366
  %v1368 = vpop.f32.mrf.mxu0
  %v1369 = vadd.f32 %v1251, %v1368
  %1370 = vmatmul.bf16.gmra.mxu0 %v1289
  %v1371 = vpop.f32.mrf.mxu0
  %v1372 = vadd.f32 %v1251, %v1371
  %v1373 = vpop.f32.mrf.mxu0
  %v1374 = vadd.f32 %v1251, %v1373
  %1375 = vmatmul.bf16.gmra.mxu0 %v1292
  %v1376 = vpop.f32.mrf.mxu0
  %v1377 = vadd.f32 %v1251, %v1376
  %v1378 = vpop.f32.mrf.mxu0
  %v1379 = vadd.f32 %v1251, %v1378
  %1380 = vmatmul.bf16.gmra.mxu0 %v1295
  %v1381 = vpop.f32.mrf.mxu0
  %v1382 = vadd.f32 %v1251, %v1381
  %v1383 = vpop.f32.mrf.mxu0
  %v1384 = vadd.f32 %v1251, %v1383
  %1385 = vmatmul.bf16.gmra.mxu0 %v1298
  %v1386 = vpop.f32.mrf.mxu0
  %v1387 = vadd.f32 %v1251, %v1386
  %v1388 = vpop.f32.mrf.mxu0
  %v1389 = vadd.f32 %v1251, %v1388
  %1390 = vmatmul.bf16.gmra.mxu0 %v1301
  %v1391 = vpop.f32.mrf.mxu0
  %v1392 = vadd.f32 %v1251, %v1391
  %v1393 = vpop.f32.mrf.mxu0
  %v1394 = vadd.f32 %v1251, %v1393
  %1395 = vmatmul.bf16.gmra.mxu0 %v1304
  %v1396 = vpop.f32.mrf.mxu0
  %v1397 = vadd.f32 %v1251, %v1396
  %v1398 = vpop.f32.mrf.mxu0
  %v1399 = vadd.f32 %v1251, %v1398
  %1400 = vmatmul.bf16.gmra.mxu0 %v1307
  %v1401 = vpop.f32.mrf.mxu0
  %v1402 = vadd.f32 %v1251, %v1401
  %v1403 = vpop.f32.mrf.mxu0
  %v1404 = vadd.f32 %v1251, %v1403
  %1405 = vmatmul.bf16.gmra.mxu0 %v1310
  %v1406 = vpop.f32.mrf.mxu0
  %v1407 = vadd.f32 %v1251, %v1406
  %v1408 = vpop.f32.mrf.mxu0
  %v1409 = vadd.f32 %v1251, %v1408
  %1410 = vmatmul.bf16.gmra.mxu0 %v1313
  %v1411 = vpop.f32.mrf.mxu0
  %v1412 = vadd.f32 %v1251, %v1411
  %v1413 = vpop.f32.mrf.mxu0
  %v1414 = vadd.f32 %v1251, %v1413
  %1415 = vmatmul.bf16.gmra.mxu0 %v1316
  %v1416 = vpop.f32.mrf.mxu0
  %v1417 = vadd.f32 %v1251, %v1416
  %v1418 = vpop.f32.mrf.mxu0
  %v1419 = vadd.f32 %v1251, %v1418
  %1420 = vmatmul.bf16.gmra.mxu0 %v1319
  %v1421 = vpop.f32.mrf.mxu0
  %v1422 = vadd.f32 %v1251, %v1421
  %v1423 = vpop.f32.mrf.mxu0
  %v1424 = vadd.f32 %v1251, %v1423
  %1425 = vmatmul.bf16.gmra.mxu0 %v1322
  %v1426 = vpop.f32.mrf.mxu0
  %v1427 = vadd.f32 %v1251, %v1426
  %v1428 = vpop.f32.mrf.mxu0
  %v1429 = vadd.f32 %v1251, %v1428
  %1430 = vmatmul.bf16.gmra.mxu0 %v1325
  %v1431 = vpop.f32.mrf.mxu0
  %v1432 = vadd.f32 %v1251, %v1431
  %v1433 = vpop.f32.mrf.mxu0
  %v1434 = vadd.f32 %v1251, %v1433
  %1435 = vmatmul.bf16.gmra.mxu0 %v1328
  %v1436 = vpop.f32.mrf.mxu0
  %v1437 = vadd.f32 %v1251, %v1436
  %v1438 = vpop.f32.mrf.mxu0
  %v1439 = vadd.f32 %v1251, %v1438
  %1440 = vmatmul.bf16.gmra.mxu0 %v1331
  %v1441 = vpop.f32.mrf.mxu0
  %v1442 = vadd.f32 %v1251, %v1441
  %v1443 = vpop.f32.mrf.mxu0
  %v1444 = vadd.f32 %v1251, %v1443
  %1445 = vmatmul.bf16.gmra.mxu0 %v1334
  %v1446 = vpop.f32.mrf.mxu0
  %v1447 = vadd.f32 %v1251, %v1446
  %v1448 = vpop.f32.mrf.mxu0
  %v1449 = vadd.f32 %v1251, %v1448
  %1450 = vmatmul.bf16.gmra.mxu0 %v1337
  %v1451 = vpop.f32.mrf.mxu0
  %v1452 = vadd.f32 %v1251, %v1451
  %v1453 = vpop.f32.mrf.mxu0
  %v1454 = vadd.f32 %v1251, %v1453
  %1455 = vmatmul.bf16.gmra.mxu0 %v1340
  %v1456 = vpop.f32.mrf.mxu0
  %v1457 = vadd.f32 %v1251, %v1456
  %v1458 = vpop.f32.mrf.mxu0
  %1459 = vdwg.mxu0
  %v1460 = vmax.f32 %v1352, 0.0
  %v1461 = vmax.f32 %v1354, 0.0
  %v1462 = vmax.f32 %v1357, 0.0
  %v1463 = vmax.f32 %v1359, 0.0
  %v1464 = vmax.f32 %v1362, 0.0
  %v1465 = vmax.f32 %v1364, 0.0
  %v1466 = vmax.f32 %v1367, 0.0
  %v1467 = vmax.f32 %v1369, 0.0
  %v1468 = vmax.f32 %v1372, 0.0
  %v1469 = vmax.f32 %v1374, 0.0
  %v1470 = vmax.f32 %v1377, 0.0
  %v1471 = vmax.f32 %v1379, 0.0
  %v1472 = vmax.f32 %v1382, 0.0
  %v1473 = vmax.f32 %v1384, 0.0
  %v1474 = vmax.f32 %v1387, 0.0
  %v1475 = vmax.f32 %v1389, 0.0
  %v1476 = vmax.f32 %v1392, 0.0
  %v1477 = vmax.f32 %v1394, 0.0
  %v1478 = vmax.f32 %v1397, 0.0
  %v1479 = vmax.f32 %v1399, 0.0
  %v1480 = vmax.f32 %v1402, 0.0
  %v1481 = vmax.f32 %v1404, 0.0
  %v1482 = vmax.f32 %v1407, 0.0
  %v1483 = vmax.f32 %v1409, 0.0
  %v1484 = vmax.f32 %v1412, 0.0
  %v1485 = vmax.f32 %v1414, 0.0
  %v1486 = vmax.f32 %v1417, 0.0
  %v1487 = vmax.f32 %v1419, 0.0
  %v1488 = vmax.f32 %v1422, 0.0
  %v1489 = vmax.f32 %v1424, 0.0
  %v1490 = vmax.f32 %v1427, 0.0
  %v1491 = vmax.f32 %v1429, 0.0
  %v1492 = vmax.f32 %v1432, 0.0
  %v1493 = vmax.f32 %v1434, 0.0
  %v1494 = vmax.f32 %v1437, 0.0
  %v1495 = vmax.f32 %v1439, 0.0
  %v1496 = vmax.f32 %v1442, 0.0
  %v1497 = vmax.f32 %v1444, 0.0
  %v1498 = vmax.f32 %v1447, 0.0
  %v1499 = vmax.f32 %v1449, 0.0
  %v1500 = vmax.f32 %v1452, 0.0
  %v1501 = vmax.f32 %v1454, 0.0
  %v1502 = vmax.f32 %v1457, 0.0
  %v1503 = vpack.c.bf16 %v1461, %v1460
  %v1504 = vpack.c.bf16 %v1463, %v1462
  %v1505 = vpack.c.bf16 %v1465, %v1464
  %v1506 = vpack.c.bf16 %v1467, %v1466
  %v1507 = vpack.c.bf16 %v1469, %v1468
  %v1508 = vpack.c.bf16 %v1471, %v1470
  %v1509 = vpack.c.bf16 %v1473, %v1472
  %v1510 = vpack.c.bf16 %v1475, %v1474
  %v1511 = vpack.c.bf16 %v1477, %v1476
  %v1512 = vpack.c.bf16 %v1479, %v1478
  %v1513 = vpack.c.bf16 %v1481, %v1480
  %v1514 = vpack.c.bf16 %v1483, %v1482
  %v1515 = vpack.c.bf16 %v1485, %v1484
  %v1516 = vpack.c.bf16 %v1487, %v1486
  %v1517 = vpack.c.bf16 %v1489, %v1488
  %v1518 = vpack.c.bf16 %v1491, %v1490
  %v1519 = vpack.c.bf16 %v1493, %v1492
  %v1520 = vpack.c.bf16 %v1495, %v1494
  %v1521 = vpack.c.bf16 %v1497, %v1496
  %v1522 = vpack.c.bf16 %v1499, %v1498
  %v1523 = vpack.c.bf16 %v1501, %v1500
  %v1524 = vpack.c.bf16 %v1502, %v1502
  %v1525 = vld [vmem:[%s2 + $0x80] sm:$0xf]
  %v1526 = vld [vmem:[%s2 + $0x84] sm:$0xf]
  %v1527 = vld [vmem:[%s2 + $0x88] sm:$0xf]
  %v1528 = vld [vmem:[%s2 + $0x8c] sm:$0xf]
  %v1529 = vld [vmem:[%s2 + $0x90] sm:$0xf]
  %v1530 = vld [vmem:[%s2 + $0x94] sm:$0xf]
  %v1531 = vld [vmem:[%s2 + $0x98] sm:$0xf]
  %v1532 = vld [vmem:[%s2 + $0x9c] sm:$0xf]
  %v1541 = vunpack.c.l.b16 %v1525
  %v1542 = vunpack.c.l.b16 %v1526
  %v1543 = vunpack.c.l.b16 %v1527
  %v1544 = vunpack.c.l.b16 %v1528
  %v1545 = vunpack.c.l.b16 %v1529
  %v1546 = vunpack.c.l.b16 %v1530
  %v1547 = vunpack.c.l.b16 %v1531
  %v1548 = vunpack.c.l.b16 %v1532
  %v1549 = vpack.c.b16 %v1542, %v1541
  %v1550 = vpack.c.b16 %v1544, %v1543
  %v1551 = vpack.c.b16 %v1546, %v1545
  %v1552 = vpack.c.b16 %v1548, %v1547
  %1600 = vrot.lane.b32.xlu0 %v174, 64
  %v1601 = vpop.permute.xlu0 %1600
  %1602 = vrot.lane.b32.xlu0 %v176, 64
  %v1603 = vpop.permute.xlu0 %1602
  %1604 = vrot.lane.b32.xlu0 %v179, 64
  %v1605 = vpop.permute.xlu0 %1604
  %1606 = vrot.lane.b32.xlu0 %v181, 64
  %v1607 = vpop.permute.xlu0 %1606
  %1608 = vrot.lane.b32.xlu0 %v184, 64
  %v1609 = vpop.permute.xlu0 %1608
  %1610 = vrot.lane.b32.xlu0 %v186, 64
  %v1611 = vpop.permute.xlu0 %1610
  %1612 = vrot.lane.b32.xlu0 %v189, 64
  %v1613 = vpop.permute.xlu0 %1612
  %1614 = vrot.lane.b32.xlu0 %v191, 64
  %v1615 = vpop.permute.xlu0 %1614
  %1616 = vrot.lane.b32.xlu0 %v194, 64
  %v1617 = vpop.permute.xlu0 %1616
  %1618 = vrot.lane.b32.xlu0 %v196, 64
  %v1619 = vpop.permute.xlu0 %1618
  %1620 = vrot.lane.b32.xlu0 %v199, 64
  %v1621 = vpop.permute.xlu0 %1620
  %1622 = vrot.lane.b32.xlu0 %v201, 64
  %v1623 = vpop.permute.xlu0 %1622
  %1624 = vrot.lane.b32.xlu0 %v204, 64
  %v1625 = vpop.permute.xlu0 %1624
  %1626 = vrot.lane.b32.xlu0 %v206, 64
  %v1627 = vpop.permute.xlu0 %1626
  %1628 = vrot.lane.b32.xlu0 %v209, 64
  %v1629 = vpop.permute.xlu0 %1628
  %1630 = vrot.lane.b32.xlu0 %v211, 64
  %v1631 = vpop.permute.xlu0 %1630
  %1632 = vrot.lane.b32.xlu0 %v214, 64
  %v1633 = vpop.permute.xlu0 %1632
  %1634 = vrot.lane.b32.xlu0 %v216, 64
  %v1635 = vpop.permute.xlu0 %1634
  %1636 = vrot.lane.b32.xlu0 %v219, 64
  %v1637 = vpop.permute.xlu0 %1636
  %1638 = vrot.lane.b32.xlu0 %v221, 64
  %v1639 = vpop.permute.xlu0 %1638
  %1640 = vrot.lane.b32.xlu0 %v224, 64
  %v1641 = vpop.permute.xlu0 %1640
  %1642 = vrot.lane.b32.xlu0 %v226, 64
  %v1643 = vpop.permute.xlu0 %1642
  %1644 = vrot.lane.b32.xlu0 %v229, 64
  %v1645 = vpop.permute.xlu0 %1644
  %1646 = vrot.lane.b32.xlu0 %v231, 64
  %v1647 = vpop.permute.xlu0 %1646
  %1648 = vrot.lane.b32.xlu0 %v234, 64
  %v1649 = vpop.permute.xlu0 %1648
  %1650 = vrot.lane.b32.xlu0 %v236, 64
  %v1651 = vpop.permute.xlu0 %1650
  %1652 = vrot.lane.b32.xlu0 %v239, 64
  %v1653 = vpop.permute.xlu0 %1652
  %1654 = vrot.lane.b32.xlu0 %v241, 64
  %v1655 = vpop.permute.xlu0 %1654
  %1656 = vrot.lane.b32.xlu0 %v244, 64
  %v1657 = vpop.permute.xlu0 %1656
  %1658 = vrot.lane.b32.xlu0 %v246, 64
  %v1659 = vpop.permute.xlu0 %1658
  %1660 = vrot.lane.b32.xlu0 %v249, 64
  %v1661 = vpop.permute.xlu0 %1660
  %1662 = vrot.lane.b32.xlu0 %v251, 64
  %v1663 = vpop.permute.xlu0 %1662
  %1664 = vrot.lane.b32.xlu0 %v254, 64
  %v1665 = vpop.permute.xlu0 %1664
  %1666 = vrot.lane.b32.xlu0 %v256, 64
  %v1667 = vpop.permute.xlu0 %1666
  %1668 = vrot.lane.b32.xlu0 %v259, 64
  %v1669 = vpop.permute.xlu0 %1668
  %1670 = vrot.lane.b32.xlu0 %v261, 64
  %v1671 = vpop.permute.xlu0 %1670
  %1672 = vrot.lane.b32.xlu0 %v264, 64
  %v1673 = vpop.permute.xlu0 %1672
  %1674 = vrot.lane.b32.xlu0 %v266, 64
  %v1675 = vpop.permute.xlu0 %1674
  %1676 = vrot.lane.b32.xlu0 %v269, 64
  %v1677 = vpop.permute.xlu0 %1676
  %1678 = vrot.lane.b32.xlu0 %v271, 64
  %v1679 = vpop.permute.xlu0 %1678
  %1680 = vrot.lane.b32.xlu0 %v274, 64
  %v1681 = vpop.permute.xlu0 %1680
  %1682 = vrot.lane.b32.xlu0 %v276, 64
  %v1683 = vpop.permute.xlu0 %1682
  %1684 = vrot.lane.b32.xlu0 %v279, 64
  %v1685 = vpop.permute.xlu0 %1684
  %v1730 = vsel %vm426, %v1503, 0
  %v1733 = vsel %vm426, %v1504, 0
  %v1736 = vsel %vm426, %v1505, 0
  %v1739 = vsel %vm426, %v1506, 0
  %v1742 = vsel %vm426, %v1507, 0
  %v1745 = vsel %vm426, %v1508, 0
  %v1748 = vsel %vm426, %v1509, 0
  %v1751 = vsel %vm426, %v1510, 0
  %v1754 = vsel %vm426, %v1511, 0
  %v1757 = vsel %vm426, %v1512, 0
  %v1760 = vsel %vm426, %v1513, 0
  %v1763 = vsel %vm426, %v1514, 0
  %v1766 = vsel %vm426, %v1515, 0
  %v1769 = vsel %vm426, %v1516, 0
  %v1772 = vsel %vm426, %v1517, 0
  %v1775 = vsel %vm426, %v1518, 0
  %v1778 = vsel %vm426, %v1519, 0
  %v1781 = vsel %vm426, %v1520, 0
  %v1784 = vsel %vm426, %v1521, 0
  %v1787 = vsel %vm426, %v1522, 0
  %v1790 = vsel %vm426, %v1523, 0
  %v1793 = vsel %vm426, %v1524, 0
  %1795 = vmatpush.bf16.msra.mxu0 0
  %1796 = vmatpush.bf16.msra.mxu0 0
  %1797 = vmatpush.bf16.msra.mxu0 0
  %1798 = vmatpush.bf16.msra.mxu0 0
  %1799 = vmatpush.bf16.msra.mxu0 %v1552
  %1800 = vmatpush.bf16.msra.mxu0 %v1551
  %1801 = vmatpush.bf16.msra.mxu0 %v1550
  %1802 = vmatpush.bf16.msra.mxu0 %v1549
  %1803 = vmatmul.bf16.gmra.mxu0 %v1730
  %v1804 = vpop.f32.mrf.mxu0
  %v1805 = vadd.f32 %v1601, %v1804
  %v1806 = vpop.f32.mrf.mxu0
  %v1807 = vadd.f32 %v1603, %v1806
  %1808 = vmatmul.bf16.gmra.mxu0 %v1733
  %v1809 = vpop.f32.mrf.mxu0
  %v1810 = vadd.f32 %v1605, %v1809
  %v1811 = vpop.f32.mrf.mxu0
  %v1812 = vadd.f32 %v1607, %v1811
  %1813 = vmatmul.bf16.gmra.mxu0 %v1736
  %v1814 = vpop.f32.mrf.mxu0
  %v1815 = vadd.f32 %v1609, %v1814
  %v1816 = vpop.f32.mrf.mxu0
  %v1817 = vadd.f32 %v1611, %v1816
  %1818 = vmatmul.bf16.gmra.mxu0 %v1739
  %v1819 = vpop.f32.mrf.mxu0
  %v1820 = vadd.f32 %v1613, %v1819
  %v1821 = vpop.f32.mrf.mxu0
  %v1822 = vadd.f32 %v1615, %v1821
  %1823 = vmatmul.bf16.gmra.mxu0 %v1742
  %v1824 = vpop.f32.mrf.mxu0
  %v1825 = vadd.f32 %v1617, %v1824
  %v1826 = vpop.f32.mrf.mxu0
  %v1827 = vadd.f32 %v1619, %v1826
  %1828 = vmatmul.bf16.gmra.mxu0 %v1745
  %v1829 = vpop.f32.mrf.mxu0
  %v1830 = vadd.f32 %v1621, %v1829
  %v1831 = vpop.f32.mrf.mxu0
  %v1832 = vadd.f32 %v1623, %v1831
  %1833 = vmatmul.bf16.gmra.mxu0 %v1748
  %v1834 = vpop.f32.mrf.mxu0
  %v1835 = vadd.f32 %v1625, %v1834
  %v1836 = vpop.f32.mrf.mxu0
  %v1837 = vadd.f32 %v1627, %v1836
  %1838 = vmatmul.bf16.gmra.mxu0 %v1751
  %v1839 = vpop.f32.mrf.mxu0
  %v1840 = vadd.f32 %v1629, %v1839
  %v1841 = vpop.f32.mrf.mxu0
  %v1842 = vadd.f32 %v1631, %v1841
  %1843 = vmatmul.bf16.gmra.mxu0 %v1754
  %v1844 = vpop.f32.mrf.mxu0
  %v1845 = vadd.f32 %v1633, %v1844
  %v1846 = vpop.f32.mrf.mxu0
  %v1847 = vadd.f32 %v1635, %v1846
  %1848 = vmatmul.bf16.gmra.mxu0 %v1757
  %v1849 = vpop.f32.mrf.mxu0
  %v1850 = vadd.f32 %v1637, %v1849
  %v1851 = vpop.f32.mrf.mxu0
  %v1852 = vadd.f32 %v1639, %v1851
  %1853 = vmatmul.bf16.gmra.mxu0 %v1760
  %v1854 = vpop.f32.mrf.mxu0
  %v1855 = vadd.f32 %v1641, %v1854
  %v1856 = vpop.f32.mrf.mxu0
  %v1857 = vadd.f32 %v1643, %v1856
  %1858 = vmatmul.bf16.gmra.mxu0 %v1763
  %v1859 = vpop.f32.mrf.mxu0
  %v1860 = vadd.f32 %v1645, %v1859
  %v1861 = vpop.f32.mrf.mxu0
  %v1862 = vadd.f32 %v1647, %v1861
  %1863 = vmatmul.bf16.gmra.mxu0 %v1766
  %v1864 = vpop.f32.mrf.mxu0
  %v1865 = vadd.f32 %v1649, %v1864
  %v1866 = vpop.f32.mrf.mxu0
  %v1867 = vadd.f32 %v1651, %v1866
  %1868 = vmatmul.bf16.gmra.mxu0 %v1769
  %v1869 = vpop.f32.mrf.mxu0
  %v1870 = vadd.f32 %v1653, %v1869
  %v1871 = vpop.f32.mrf.mxu0
  %v1872 = vadd.f32 %v1655, %v1871
  %1873 = vmatmul.bf16.gmra.mxu0 %v1772
  %v1874 = vpop.f32.mrf.mxu0
  %v1875 = vadd.f32 %v1657, %v1874
  %v1876 = vpop.f32.mrf.mxu0
  %v1877 = vadd.f32 %v1659, %v1876
  %1878 = vmatmul.bf16.gmra.mxu0 %v1775
  %v1879 = vpop.f32.mrf.mxu0
  %v1880 = vadd.f32 %v1661, %v1879
  %v1881 = vpop.f32.mrf.mxu0
  %v1882 = vadd.f32 %v1663, %v1881
  %1883 = vmatmul.bf16.gmra.mxu0 %v1778
  %v1884 = vpop.f32.mrf.mxu0
  %v1885 = vadd.f32 %v1665, %v1884
  %v1886 = vpop.f32.mrf.mxu0
  %v1887 = vadd.f32 %v1667, %v1886
  %1888 = vmatmul.bf16.gmra.mxu0 %v1781
  %v1889 = vpop.f32.mrf.mxu0
  %v1890 = vadd.f32 %v1669, %v1889
  %v1891 = vpop.f32.mrf.mxu0
  %v1892 = vadd.f32 %v1671, %v1891
  %1893 = vmatmul.bf16.gmra.mxu0 %v1784
  %v1894 = vpop.f32.mrf.mxu0
  %v1895 = vadd.f32 %v1673, %v1894
  %v1896 = vpop.f32.mrf.mxu0
  %v1897 = vadd.f32 %v1675, %v1896
  %1898 = vmatmul.bf16.gmra.mxu0 %v1787
  %v1899 = vpop.f32.mrf.mxu0
  %v1900 = vadd.f32 %v1677, %v1899
  %v1901 = vpop.f32.mrf.mxu0
  %v1902 = vadd.f32 %v1679, %v1901
  %1903 = vmatmul.bf16.gmra.mxu0 %v1790
  %v1904 = vpop.f32.mrf.mxu0
  %v1905 = vadd.f32 %v1681, %v1904
  %v1906 = vpop.f32.mrf.mxu0
  %v1907 = vadd.f32 %v1683, %v1906
  %1908 = vmatmul.bf16.gmra.mxu0 %v1793
  %v1909 = vpop.f32.mrf.mxu0
  %v1910 = vadd.f32 %v1685, %v1909
  %v1911 = vpop.f32.mrf.mxu0
  %1912 = vdwg.mxu0
  %v1913 = vld [vmem:[%s3 + $0x5] sm:$0x1]
  %v1914 = vperm.slane %v1913, 0
  %v1915 = vadd.f32 %v1805, %v1914
  %v1916 = vadd.f32 %v1807, %v1914
  %v1917 = vadd.f32 %v1810, %v1914
  %v1918 = vadd.f32 %v1812, %v1914
  %v1919 = vadd.f32 %v1815, %v1914
  %v1920 = vadd.f32 %v1817, %v1914
  %v1921 = vadd.f32 %v1820, %v1914
  %v1922 = vadd.f32 %v1822, %v1914
  %v1923 = vadd.f32 %v1825, %v1914
  %v1924 = vadd.f32 %v1827, %v1914
  %v1925 = vadd.f32 %v1830, %v1914
  %v1926 = vadd.f32 %v1832, %v1914
  %v1927 = vadd.f32 %v1835, %v1914
  %v1928 = vadd.f32 %v1837, %v1914
  %v1929 = vadd.f32 %v1840, %v1914
  %v1930 = vadd.f32 %v1842, %v1914
  %v1931 = vadd.f32 %v1845, %v1914
  %v1932 = vadd.f32 %v1847, %v1914
  %v1933 = vadd.f32 %v1850, %v1914
  %v1934 = vadd.f32 %v1852, %v1914
  %v1935 = vadd.f32 %v1855, %v1914
  %v1936 = vadd.f32 %v1857, %v1914
  %v1937 = vadd.f32 %v1860, %v1914
  %v1938 = vadd.f32 %v1862, %v1914
  %v1939 = vadd.f32 %v1865, %v1914
  %v1940 = vadd.f32 %v1867, %v1914
  %v1941 = vadd.f32 %v1870, %v1914
  %v1942 = vadd.f32 %v1872, %v1914
  %v1943 = vadd.f32 %v1875, %v1914
  %v1944 = vadd.f32 %v1877, %v1914
  %v1945 = vadd.f32 %v1880, %v1914
  %v1946 = vadd.f32 %v1882, %v1914
  %v1947 = vadd.f32 %v1885, %v1914
  %v1948 = vadd.f32 %v1887, %v1914
  %v1949 = vadd.f32 %v1890, %v1914
  %v1950 = vadd.f32 %v1892, %v1914
  %v1951 = vadd.f32 %v1895, %v1914
  %v1952 = vadd.f32 %v1897, %v1914
  %v1953 = vadd.f32 %v1900, %v1914
  %v1954 = vadd.f32 %v1902, %v1914
  %v1955 = vadd.f32 %v1905, %v1914
  %v1956 = vadd.f32 %v1907, %v1914
  %v1957 = vadd.f32 %v1910, %v1914
  %v1958 = vmax.f32 %v1915, 0.0
  %v1959 = vmax.f32 %v1916, 0.0
  %v1960 = vmax.f32 %v1917, 0.0
  %v1961 = vmax.f32 %v1918, 0.0
  %v1962 = vmax.f32 %v1919, 0.0
  %v1963 = vmax.f32 %v1920, 0.0
  %v1964 = vmax.f32 %v1921, 0.0
  %v1965 = vmax.f32 %v1922, 0.0
  %v1966 = vmax.f32 %v1923, 0.0
  %v1967 = vmax.f32 %v1924, 0.0
  %v1968 = vmax.f32 %v1925, 0.0
  %v1969 = vmax.f32 %v1926, 0.0
  %v1970 = vmax.f32 %v1927, 0.0
  %v1971 = vmax.f32 %v1928, 0.0
  %v1972 = vmax.f32 %v1929, 0.0
  %v1973 = vmax.f32 %v1930, 0.0
  %v1974 = vmax.f32 %v1931, 0.0
  %v1975 = vmax.f32 %v1932, 0.0
  %v1976 = vmax.f32 %v1933, 0.0
  %v1977 = vmax.f32 %v1934, 0.0
  %v1978 = vmax.f32 %v1935, 0.0
  %v1979 = vmax.f32 %v1936, 0.0
  %v1980 = vmax.f32 %v1937, 0.0
  %v1981 = vmax.f32 %v1938, 0.0
  %v1982 = vmax.f32 %v1939, 0.0
  %v1983 = vmax.f32 %v1940, 0.0
  %v1984 = vmax.f32 %v1941, 0.0
  %v1985 = vmax.f32 %v1942, 0.0
  %v1986 = vmax.f32 %v1943, 0.0
  %v1987 = vmax.f32 %v1944, 0.0
  %v1988 = vmax.f32 %v1945, 0.0
  %v1989 = vmax.f32 %v1946, 0.0
  %v1990 = vmax.f32 %v1947, 0.0
  %v1991 = vmax.f32 %v1948, 0.0
  %v1992 = vmax.f32 %v1949, 0.0
  %v1993 = vmax.f32 %v1950, 0.0
  %v1994 = vmax.f32 %v1951, 0.0
  %v1995 = vmax.f32 %v1952, 0.0
  %v1996 = vmax.f32 %v1953, 0.0
  %v1997 = vmax.f32 %v1954, 0.0
  %v1998 = vmax.f32 %v1955, 0.0
  %v1999 = vmax.f32 %v1956, 0.0
  %v2000 = vmax.f32 %v1957, 0.0
  %v2001 = vpack.c.bf16 %v1959, %v1958
  %v2002 = vpack.c.bf16 %v1961, %v1960
  %v2003 = vpack.c.bf16 %v1963, %v1962
  %v2004 = vpack.c.bf16 %v1965, %v1964
  %v2005 = vpack.c.bf16 %v1967, %v1966
  %v2006 = vpack.c.bf16 %v1969, %v1968
  %v2007 = vpack.c.bf16 %v1971, %v1970
  %v2008 = vpack.c.bf16 %v1973, %v1972
  %v2009 = vpack.c.bf16 %v1975, %v1974
  %v2010 = vpack.c.bf16 %v1977, %v1976
  %v2011 = vpack.c.bf16 %v1979, %v1978
  %v2012 = vpack.c.bf16 %v1981, %v1980
  %v2013 = vpack.c.bf16 %v1983, %v1982
  %v2014 = vpack.c.bf16 %v1985, %v1984
  %v2015 = vpack.c.bf16 %v1987, %v1986
  %v2016 = vpack.c.bf16 %v1989, %v1988
  %v2017 = vpack.c.bf16 %v1991, %v1990
  %v2018 = vpack.c.bf16 %v1993, %v1992
  %v2019 = vpack.c.bf16 %v1995, %v1994
  %v2020 = vpack.c.bf16 %v1997, %v1996
  %v2021 = vpack.c.bf16 %v1999, %v1998
  %v2022 = vpack.c.bf16 %v2000, %v2000
  %v2023 = vld [vmem:[%s2 + $0xa0] sm:$0xf]
  %v2024 = vld [vmem:[%s2 + $0xa4] sm:$0xf]
  %v2025 = vld [vmem:[%s2 + $0xa8] sm:$0xf]
  %v2026 = vld [vmem:[%s2 + $0xac] sm:$0xf]
  %v2027 = vld [vmem:[%s2 + $0xb0] sm:$0xf]
  %v2028 = vld [vmem:[%s2 + $0xb4] sm:$0xf]
  %v2029 = vld [vmem:[%s2 + $0xb8] sm:$0xf]
  %v2030 = vld [vmem:[%s2 + $0xbc] sm:$0xf]
  %v2031 = vld [vmem:[%s3 + $0x6] sm:$0x1]
  %v2032 = vperm.slane %v2031, 0
  %v2041 = vunpack.c.l.b16 %v2023
  %v2042 = vunpack.c.l.b16 %v2024
  %v2043 = vunpack.c.l.b16 %v2025
  %v2044 = vunpack.c.l.b16 %v2026
  %v2045 = vunpack.c.l.b16 %v2027
  %v2046 = vunpack.c.l.b16 %v2028
  %v2047 = vunpack.c.l.b16 %v2029
  %v2048 = vunpack.c.l.b16 %v2030
  %v2049 = vpack.c.b16 %v2042, %v2041
  %v2050 = vpack.c.b16 %v2044, %v2043
  %v2051 = vpack.c.b16 %v2046, %v2045
  %v2052 = vpack.c.b16 %v2048, %v2047
  %v2058 = vsel %vm426, %v2001, 0
  %v2061 = vsel %vm426, %v2002, 0
  %v2064 = vsel %vm426, %v2003, 0
  %v2067 = vsel %vm426, %v2004, 0
  %v2070 = vsel %vm426, %v2005, 0
  %v2073 = vsel %vm426, %v2006, 0
  %v2076 = vsel %vm426, %v2007, 0
  %v2079 = vsel %vm426, %v2008, 0
  %v2082 = vsel %vm426, %v2009, 0
  %v2085 = vsel %vm426, %v2010, 0
  %v2088 = vsel %vm426, %v2011, 0
  %v2091 = vsel %vm426, %v2012, 0
  %v2094 = vsel %vm426, %v2013, 0
  %v2097 = vsel %vm426, %v2014, 0
  %v2100 = vsel %vm426, %v2015, 0
  %v2103 = vsel %vm426, %v2016, 0
  %v2106 = vsel %vm426, %v2017, 0
  %v2109 = vsel %vm426, %v2018, 0
  %v2112 = vsel %vm426, %v2019, 0
  %v2115 = vsel %vm426, %v2020, 0
  %v2118 = vsel %vm426, %v2021, 0
  %v2121 = vsel %vm426, %v2022, 0
  %2123 = vmatpush.bf16.msra.mxu0 0
  %2124 = vmatpush.bf16.msra.mxu0 0
  %2125 = vmatpush.bf16.msra.mxu0 0
  %2126 = vmatpush.bf16.msra.mxu0 0
  %2127 = vmatpush.bf16.msra.mxu0 %v2052
  %2128 = vmatpush.bf16.msra.mxu0 %v2051
  %2129 = vmatpush.bf16.msra.mxu0 %v2050
  %2130 = vmatpush.bf16.msra.mxu0 %v2049
  %2131 = vmatmul.bf16.gmra.mxu0 %v2058
  %v2132 = vpop.f32.mrf.mxu0
  %v2133 = vadd.f32 %v2032, %v2132
  %v2134 = vpop.f32.mrf.mxu0
  %v2135 = vadd.f32 %v2032, %v2134
  %2136 = vmatmul.bf16.gmra.mxu0 %v2061
  %v2137 = vpop.f32.mrf.mxu0
  %v2138 = vadd.f32 %v2032, %v2137
  %v2139 = vpop.f32.mrf.mxu0
  %v2140 = vadd.f32 %v2032, %v2139
  %2141 = vmatmul.bf16.gmra.mxu0 %v2064
  %v2142 = vpop.f32.mrf.mxu0
  %v2143 = vadd.f32 %v2032, %v2142
  %v2144 = vpop.f32.mrf.mxu0
  %v2145 = vadd.f32 %v2032, %v2144
  %2146 = vmatmul.bf16.gmra.mxu0 %v2067
  %v2147 = vpop.f32.mrf.mxu0
  %v2148 = vadd.f32 %v2032, %v2147
  %v2149 = vpop.f32.mrf.mxu0
  %v2150 = vadd.f32 %v2032, %v2149
  %2151 = vmatmul.bf16.gmra.mxu0 %v2070
  %v2152 = vpop.f32.mrf.mxu0
  %v2153 = vadd.f32 %v2032, %v2152
  %v2154 = vpop.f32.mrf.mxu0
  %v2155 = vadd.f32 %v2032, %v2154
  %2156 = vmatmul.bf16.gmra.mxu0 %v2073
  %v2157 = vpop.f32.mrf.mxu0
  %v2158 = vadd.f32 %v2032, %v2157
  %v2159 = vpop.f32.mrf.mxu0
  %v2160 = vadd.f32 %v2032, %v2159
  %2161 = vmatmul.bf16.gmra.mxu0 %v2076
  %v2162 = vpop.f32.mrf.mxu0
  %v2163 = vadd.f32 %v2032, %v2162
  %v2164 = vpop.f32.mrf.mxu0
  %v2165 = vadd.f32 %v2032, %v2164
  %2166 = vmatmul.bf16.gmra.mxu0 %v2079
  %v2167 = vpop.f32.mrf.mxu0
  %v2168 = vadd.f32 %v2032, %v2167
  %v2169 = vpop.f32.mrf.mxu0
  %v2170 = vadd.f32 %v2032, %v2169
  %2171 = vmatmul.bf16.gmra.mxu0 %v2082
  %v2172 = vpop.f32.mrf.mxu0
  %v2173 = vadd.f32 %v2032, %v2172
  %v2174 = vpop.f32.mrf.mxu0
  %v2175 = vadd.f32 %v2032, %v2174
  %2176 = vmatmul.bf16.gmra.mxu0 %v2085
  %v2177 = vpop.f32.mrf.mxu0
  %v2178 = vadd.f32 %v2032, %v2177
  %v2179 = vpop.f32.mrf.mxu0
  %v2180 = vadd.f32 %v2032, %v2179
  %2181 = vmatmul.bf16.gmra.mxu0 %v2088
  %v2182 = vpop.f32.mrf.mxu0
  %v2183 = vadd.f32 %v2032, %v2182
  %v2184 = vpop.f32.mrf.mxu0
  %v2185 = vadd.f32 %v2032, %v2184
  %2186 = vmatmul.bf16.gmra.mxu0 %v2091
  %v2187 = vpop.f32.mrf.mxu0
  %v2188 = vadd.f32 %v2032, %v2187
  %v2189 = vpop.f32.mrf.mxu0
  %v2190 = vadd.f32 %v2032, %v2189
  %2191 = vmatmul.bf16.gmra.mxu0 %v2094
  %v2192 = vpop.f32.mrf.mxu0
  %v2193 = vadd.f32 %v2032, %v2192
  %v2194 = vpop.f32.mrf.mxu0
  %v2195 = vadd.f32 %v2032, %v2194
  %2196 = vmatmul.bf16.gmra.mxu0 %v2097
  %v2197 = vpop.f32.mrf.mxu0
  %v2198 = vadd.f32 %v2032, %v2197
  %v2199 = vpop.f32.mrf.mxu0
  %v2200 = vadd.f32 %v2032, %v2199
  %2201 = vmatmul.bf16.gmra.mxu0 %v2100
  %v2202 = vpop.f32.mrf.mxu0
  %v2203 = vadd.f32 %v2032, %v2202
  %v2204 = vpop.f32.mrf.mxu0
  %v2205 = vadd.f32 %v2032, %v2204
  %2206 = vmatmul.bf16.gmra.mxu0 %v2103
  %v2207 = vpop.f32.mrf.mxu0
  %v2208 = vadd.f32 %v2032, %v2207
  %v2209 = vpop.f32.mrf.mxu0
  %v2210 = vadd.f32 %v2032, %v2209
  %2211 = vmatmul.bf16.gmra.mxu0 %v2106
  %v2212 = vpop.f32.mrf.mxu0
  %v2213 = vadd.f32 %v2032, %v2212
  %v2214 = vpop.f32.mrf.mxu0
  %v2215 = vadd.f32 %v2032, %v2214
  %2216 = vmatmul.bf16.gmra.mxu0 %v2109
  %v2217 = vpop.f32.mrf.mxu0
  %v2218 = vadd.f32 %v2032, %v2217
  %v2219 = vpop.f32.mrf.mxu0
  %v2220 = vadd.f32 %v2032, %v2219
  %2221 = vmatmul.bf16.gmra.mxu0 %v2112
  %v2222 = vpop.f32.mrf.mxu0
  %v2223 = vadd.f32 %v2032, %v2222
  %v2224 = vpop.f32.mrf.mxu0
  %v2225 = vadd.f32 %v2032, %v2224
  %2226 = vmatmul.bf16.gmra.mxu0 %v2115
  %v2227 = vpop.f32.mrf.mxu0
  %v2228 = vadd.f32 %v2032, %v2227
  %v2229 = vpop.f32.mrf.mxu0
  %v2230 = vadd.f32 %v2032, %v2229
  %2231 = vmatmul.bf16.gmra.mxu0 %v2118
  %v2232 = vpop.f32.mrf.mxu0
  %v2233 = vadd.f32 %v2032, %v2232
  %v2234 = vpop.f32.mrf.mxu0
  %v2235 = vadd.f32 %v2032, %v2234
  %2236 = vmatmul.bf16.gmra.mxu0 %v2121
  %v2237 = vpop.f32.mrf.mxu0
  %v2238 = vadd.f32 %v2032, %v2237
  %v2239 = vpop.f32.mrf.mxu0
  %2240 = vdwg.mxu0
  %v2241 = vmax.f32 %v2133, 0.0
  %v2242 = vmax.f32 %v2135, 0.0
  %v2243 = vmax.f32 %v2138, 0.0
  %v2244 = vmax.f32 %v2140, 0.0
  %v2245 = vmax.f32 %v2143, 0.0
  %v2246 = vmax.f32 %v2145, 0.0
  %v2247 = vmax.f32 %v2148, 0.0
  %v2248 = vmax.f32 %v2150, 0.0
  %v2249 = vmax.f32 %v2153, 0.0
  %v2250 = vmax.f32 %v2155, 0.0
  %v2251 = vmax.f32 %v2158, 0.0
  %v2252 = vmax.f32 %v2160, 0.0
  %v2253 = vmax.f32 %v2163, 0.0
  %v2254 = vmax.f32 %v2165, 0.0
  %v2255 = vmax.f32 %v2168, 0.0
  %v2256 = vmax.f32 %v2170, 0.0
  %v2257 = vmax.f32 %v2173, 0.0
  %v2258 = vmax.f32 %v2175, 0.0
  %v2259 = vmax.f32 %v2178, 0.0
  %v2260 = vmax.f32 %v2180, 0.0
  %v2261 = vmax.f32 %v2183, 0.0
  %v2262 = vmax.f32 %v2185, 0.0
  %v2263 = vmax.f32 %v2188, 0.0
  %v2264 = vmax.f32 %v2190, 0.0
  %v2265 = vmax.f32 %v2193, 0.0
  %v2266 = vmax.f32 %v2195, 0.0
  %v2267 = vmax.f32 %v2198, 0.0
  %v2268 = vmax.f32 %v2200, 0.0
  %v2269 = vmax.f32 %v2203, 0.0
  %v2270 = vmax.f32 %v2205, 0.0
  %v2271 = vmax.f32 %v2208, 0.0
  %v2272 = vmax.f32 %v2210, 0.0
  %v2273 = vmax.f32 %v2213, 0.0
  %v2274 = vmax.f32 %v2215, 0.0
  %v2275 = vmax.f32 %v2218, 0.0
  %v2276 = vmax.f32 %v2220, 0.0
  %v2277 = vmax.f32 %v2223, 0.0
  %v2278 = vmax.f32 %v2225, 0.0
  %v2279 = vmax.f32 %v2228, 0.0
  %v2280 = vmax.f32 %v2230, 0.0
  %v2281 = vmax.f32 %v2233, 0.0
  %v2282 = vmax.f32 %v2235, 0.0
  %v2283 = vmax.f32 %v2238, 0.0
  %v2284 = vpack.c.bf16 %v2242, %v2241
  %v2285 = vpack.c.bf16 %v2244, %v2243
  %v2286 = vpack.c.bf16 %v2246, %v2245
  %v2287 = vpack.c.bf16 %v2248, %v2247
  %v2288 = vpack.c.bf16 %v2250, %v2249
  %v2289 = vpack.c.bf16 %v2252, %v2251
  %v2290 = vpack.c.bf16 %v2254, %v2253
  %v2291 = vpack.c.bf16 %v2256, %v2255
  %v2292 = vpack.c.bf16 %v2258, %v2257
  %v2293 = vpack.c.bf16 %v2260, %v2259
  %v2294 = vpack.c.bf16 %v2262, %v2261
  %v2295 = vpack.c.bf16 %v2264, %v2263
  %v2296 = vpack.c.bf16 %v2266, %v2265
  %v2297 = vpack.c.bf16 %v2268, %v2267
  %v2298 = vpack.c.bf16 %v2270, %v2269
  %v2299 = vpack.c.bf16 %v2272, %v2271
  %v2300 = vpack.c.bf16 %v2274, %v2273
  %v2301 = vpack.c.bf16 %v2276, %v2275
  %v2302 = vpack.c.bf16 %v2278, %v2277
  %v2303 = vpack.c.bf16 %v2280, %v2279
  %v2304 = vpack.c.bf16 %v2282, %v2281
  %v2305 = vpack.c.bf16 %v2283, %v2283
  %v2306 = vld [vmem:[%s2 + $0xc0] sm:$0xf]
  %v2307 = vld [vmem:[%s2 + $0xc4] sm:$0xf]
  %v2308 = vld [vmem:[%s2 + $0xc8] sm:$0xf]
  %v2309 = vld [vmem:[%s2 + $0xcc] sm:$0xf]
  %v2310 = vld [vmem:[%s2 + $0xd0] sm:$0xf]
  %v2311 = vld [vmem:[%s2 + $0xd4] sm:$0xf]
  %v2312 = vld [vmem:[%s2 + $0xd8] sm:$0xf]
  %v2313 = vld [vmem:[%s2 + $0xdc] sm:$0xf]
  %v2314 = vld [vmem:[%s3 + $0x7] sm:$0x1]
  %v2315 = vperm.slane %v2314, 0
  %v2324 = vunpack.c.l.b16 %v2306
  %v2325 = vunpack.c.l.b16 %v2307
  %v2326 = vunpack.c.l.b16 %v2308
  %v2327 = vunpack.c.l.b16 %v2309
  %v2328 = vunpack.c.l.b16 %v2310
  %v2329 = vunpack.c.l.b16 %v2311
  %v2330 = vunpack.c.l.b16 %v2312
  %v2331 = vunpack.c.l.b16 %v2313
  %v2332 = vpack.c.b16 %v2325, %v2324
  %v2333 = vpack.c.b16 %v2327, %v2326
  %v2334 = vpack.c.b16 %v2329, %v2328
  %v2335 = vpack.c.b16 %v2331, %v2330
  %v2341 = vsel %vm426, %v2284, 0
  %v2344 = vsel %vm426, %v2285, 0
  %v2347 = vsel %vm426, %v2286, 0
  %v2350 = vsel %vm426, %v2287, 0
  %v2353 = vsel %vm426, %v2288, 0
  %v2356 = vsel %vm426, %v2289, 0
  %v2359 = vsel %vm426, %v2290, 0
  %v2362 = vsel %vm426, %v2291, 0
  %v2365 = vsel %vm426, %v2292, 0
  %v2368 = vsel %vm426, %v2293, 0
  %v2371 = vsel %vm426, %v2294, 0
  %v2374 = vsel %vm426, %v2295, 0
  %v2377 = vsel %vm426, %v2296, 0
  %v2380 = vsel %vm426, %v2297, 0
  %v2383 = vsel %vm426, %v2298, 0
  %v2386 = vsel %vm426, %v2299, 0
  %v2389 = vsel %vm426, %v2300, 0
  %v2392 = vsel %vm426, %v2301, 0
  %v2395 = vsel %vm426, %v2302, 0
  %v2398 = vsel %vm426, %v2303, 0
  %v2401 = vsel %vm426, %v2304, 0
  %v2404 = vsel %vm426, %v2305, 0
  %2406 = vmatpush.bf16.msra.mxu0 0
  %2407 = vmatpush.bf16.msra.mxu0 0
  %2408 = vmatpush.bf16.msra.mxu0 0
  %2409 = vmatpush.bf16.msra.mxu0 0
  %2410 = vmatpush.bf16.msra.mxu0 %v2335
  %2411 = vmatpush.bf16.msra.mxu0 %v2334
  %2412 = vmatpush.bf16.msra.mxu0 %v2333
  %2413 = vmatpush.bf16.msra.mxu0 %v2332
  %2414 = vmatmul.bf16.gmra.mxu0 %v2341
  %v2415 = vpop.f32.mrf.mxu0
  %v2416 = vadd.f32 %v2315, %v2415
  %v2417 = vpop.f32.mrf.mxu0
  %v2418 = vadd.f32 %v2315, %v2417
  %2419 = vmatmul.bf16.gmra.mxu0 %v2344
  %v2420 = vpop.f32.mrf.mxu0
  %v2421 = vadd.f32 %v2315, %v2420
  %v2422 = vpop.f32.mrf.mxu0
  %v2423 = vadd.f32 %v2315, %v2422
  %2424 = vmatmul.bf16.gmra.mxu0 %v2347
  %v2425 = vpop.f32.mrf.mxu0
  %v2426 = vadd.f32 %v2315, %v2425
  %v2427 = vpop.f32.mrf.mxu0
  %v2428 = vadd.f32 %v2315, %v2427
  %2429 = vmatmul.bf16.gmra.mxu0 %v2350
  %v2430 = vpop.f32.mrf.mxu0
  %v2431 = vadd.f32 %v2315, %v2430
  %v2432 = vpop.f32.mrf.mxu0
  %v2433 = vadd.f32 %v2315, %v2432
  %2434 = vmatmul.bf16.gmra.mxu0 %v2353
  %v2435 = vpop.f32.mrf.mxu0
  %v2436 = vadd.f32 %v2315, %v2435
  %v2437 = vpop.f32.mrf.mxu0
  %v2438 = vadd.f32 %v2315, %v2437
  %2439 = vmatmul.bf16.gmra.mxu0 %v2356
  %v2440 = vpop.f32.mrf.mxu0
  %v2441 = vadd.f32 %v2315, %v2440
  %v2442 = vpop.f32.mrf.mxu0
  %v2443 = vadd.f32 %v2315, %v2442
  %2444 = vmatmul.bf16.gmra.mxu0 %v2359
  %v2445 = vpop.f32.mrf.mxu0
  %v2446 = vadd.f32 %v2315, %v2445
  %v2447 = vpop.f32.mrf.mxu0
  %v2448 = vadd.f32 %v2315, %v2447
  %2449 = vmatmul.bf16.gmra.mxu0 %v2362
  %v2450 = vpop.f32.mrf.mxu0
  %v2451 = vadd.f32 %v2315, %v2450
  %v2452 = vpop.f32.mrf.mxu0
  %v2453 = vadd.f32 %v2315, %v2452
  %2454 = vmatmul.bf16.gmra.mxu0 %v2365
  %v2455 = vpop.f32.mrf.mxu0
  %v2456 = vadd.f32 %v2315, %v2455
  %v2457 = vpop.f32.mrf.mxu0
  %v2458 = vadd.f32 %v2315, %v2457
  %2459 = vmatmul.bf16.gmra.mxu0 %v2368
  %v2460 = vpop.f32.mrf.mxu0
  %v2461 = vadd.f32 %v2315, %v2460
  %v2462 = vpop.f32.mrf.mxu0
  %v2463 = vadd.f32 %v2315, %v2462
  %2464 = vmatmul.bf16.gmra.mxu0 %v2371
  %v2465 = vpop.f32.mrf.mxu0
  %v2466 = vadd.f32 %v2315, %v2465
  %v2467 = vpop.f32.mrf.mxu0
  %v2468 = vadd.f32 %v2315, %v2467
  %2469 = vmatmul.bf16.gmra.mxu0 %v2374
  %v2470 = vpop.f32.mrf.mxu0
  %v2471 = vadd.f32 %v2315, %v2470
  %v2472 = vpop.f32.mrf.mxu0
  %v2473 = vadd.f32 %v2315, %v2472
  %2474 = vmatmul.bf16.gmra.mxu0 %v2377
  %v2475 = vpop.f32.mrf.mxu0
  %v2476 = vadd.f32 %v2315, %v2475
  %v2477 = vpop.f32.mrf.mxu0
  %v2478 = vadd.f32 %v2315, %v2477
  %2479 = vmatmul.bf16.gmra.mxu0 %v2380
  %v2480 = vpop.f32.mrf.mxu0
  %v2481 = vadd.f32 %v2315, %v2480
  %v2482 = vpop.f32.mrf.mxu0
  %v2483 = vadd.f32 %v2315, %v2482
  %2484 = vmatmul.bf16.gmra.mxu0 %v2383
  %v2485 = vpop.f32.mrf.mxu0
  %v2486 = vadd.f32 %v2315, %v2485
  %v2487 = vpop.f32.mrf.mxu0
  %v2488 = vadd.f32 %v2315, %v2487
  %2489 = vmatmul.bf16.gmra.mxu0 %v2386
  %v2490 = vpop.f32.mrf.mxu0
  %v2491 = vadd.f32 %v2315, %v2490
  %v2492 = vpop.f32.mrf.mxu0
  %v2493 = vadd.f32 %v2315, %v2492
  %2494 = vmatmul.bf16.gmra.mxu0 %v2389
  %v2495 = vpop.f32.mrf.mxu0
  %v2496 = vadd.f32 %v2315, %v2495
  %v2497 = vpop.f32.mrf.mxu0
  %v2498 = vadd.f32 %v2315, %v2497
  %2499 = vmatmul.bf16.gmra.mxu0 %v2392
  %v2500 = vpop.f32.mrf.mxu0
  %v2501 = vadd.f32 %v2315, %v2500
  %v2502 = vpop.f32.mrf.mxu0
  %v2503 = vadd.f32 %v2315, %v2502
  %2504 = vmatmul.bf16.gmra.mxu0 %v2395
  %v2505 = vpop.f32.mrf.mxu0
  %v2506 = vadd.f32 %v2315, %v2505
  %v2507 = vpop.f32.mrf.mxu0
  %v2508 = vadd.f32 %v2315, %v2507
  %2509 = vmatmul.bf16.gmra.mxu0 %v2398
  %v2510 = vpop.f32.mrf.mxu0
  %v2511 = vadd.f32 %v2315, %v2510
  %v2512 = vpop.f32.mrf.mxu0
  %v2513 = vadd.f32 %v2315, %v2512
  %2514 = vmatmul.bf16.gmra.mxu0 %v2401
  %v2515 = vpop.f32.mrf.mxu0
  %v2516 = vadd.f32 %v2315, %v2515
  %v2517 = vpop.f32.mrf.mxu0
  %v2518 = vadd.f32 %v2315, %v2517
  %2519 = vmatmul.bf16.gmra.mxu0 %v2404
  %v2520 = vpop.f32.mrf.mxu0
  %v2521 = vadd.f32 %v2315, %v2520
  %v2522 = vpop.f32.mrf.mxu0
  %2523 = vdwg.mxu0
  %v2524 = vmax.f32 %v2416, 0.0
  %v2525 = vmax.f32 %v2418, 0.0
  %v2526 = vmax.f32 %v2421, 0.0
  %v2527 = vmax.f32 %v2423, 0.0
  %v2528 = vmax.f32 %v2426, 0.0
  %v2529 = vmax.f32 %v2428, 0.0
  %v2530 = vmax.f32 %v2431, 0.0
  %v2531 = vmax.f32 %v2433, 0.0
  %v2532 = vmax.f32 %v2436, 0.0
  %v2533 = vmax.f32 %v2438, 0.0
  %v2534 = vmax.f32 %v2441, 0.0
  %v2535 = vmax.f32 %v2443, 0.0
  %v2536 = vmax.f32 %v2446, 0.0
  %v2537 = vmax.f32 %v2448, 0.0
  %v2538 = vmax.f32 %v2451, 0.0
  %v2539 = vmax.f32 %v2453, 0.0
  %v2540 = vmax.f32 %v2456, 0.0
  %v2541 = vmax.f32 %v2458, 0.0
  %v2542 = vmax.f32 %v2461, 0.0
  %v2543 = vmax.f32 %v2463, 0.0
  %v2544 = vmax.f32 %v2466, 0.0
  %v2545 = vmax.f32 %v2468, 0.0
  %v2546 = vmax.f32 %v2471, 0.0
  %v2547 = vmax.f32 %v2473, 0.0
  %v2548 = vmax.f32 %v2476, 0.0
  %v2549 = vmax.f32 %v2478, 0.0
  %v2550 = vmax.f32 %v2481, 0.0
  %v2551 = vmax.f32 %v2483, 0.0
  %v2552 = vmax.f32 %v2486, 0.0
  %v2553 = vmax.f32 %v2488, 0.0
  %v2554 = vmax.f32 %v2491, 0.0
  %v2555 = vmax.f32 %v2493, 0.0
  %v2556 = vmax.f32 %v2496, 0.0
  %v2557 = vmax.f32 %v2498, 0.0
  %v2558 = vmax.f32 %v2501, 0.0
  %v2559 = vmax.f32 %v2503, 0.0
  %v2560 = vmax.f32 %v2506, 0.0
  %v2561 = vmax.f32 %v2508, 0.0
  %v2562 = vmax.f32 %v2511, 0.0
  %v2563 = vmax.f32 %v2513, 0.0
  %v2564 = vmax.f32 %v2516, 0.0
  %v2565 = vmax.f32 %v2518, 0.0
  %v2566 = vmax.f32 %v2521, 0.0
  %v2567 = vpack.c.bf16 %v2525, %v2524
  %v2568 = vpack.c.bf16 %v2527, %v2526
  %v2569 = vpack.c.bf16 %v2529, %v2528
  %v2570 = vpack.c.bf16 %v2531, %v2530
  %v2571 = vpack.c.bf16 %v2533, %v2532
  %v2572 = vpack.c.bf16 %v2535, %v2534
  %v2573 = vpack.c.bf16 %v2537, %v2536
  %v2574 = vpack.c.bf16 %v2539, %v2538
  %v2575 = vpack.c.bf16 %v2541, %v2540
  %v2576 = vpack.c.bf16 %v2543, %v2542
  %v2577 = vpack.c.bf16 %v2545, %v2544
  %v2578 = vpack.c.bf16 %v2547, %v2546
  %v2579 = vpack.c.bf16 %v2549, %v2548
  %v2580 = vpack.c.bf16 %v2551, %v2550
  %v2581 = vpack.c.bf16 %v2553, %v2552
  %v2582 = vpack.c.bf16 %v2555, %v2554
  %v2583 = vpack.c.bf16 %v2557, %v2556
  %v2584 = vpack.c.bf16 %v2559, %v2558
  %v2585 = vpack.c.bf16 %v2561, %v2560
  %v2586 = vpack.c.bf16 %v2563, %v2562
  %v2587 = vpack.c.bf16 %v2565, %v2564
  %v2588 = vpack.c.bf16 %v2566, %v2566
  %v2589 = vld [vmem:[%s2 + $0xe0] sm:$0xf]
  %v2590 = vld [vmem:[%s2 + $0xe4] sm:$0xf]
  %v2591 = vld [vmem:[%s2 + $0xe8] sm:$0xf]
  %v2592 = vld [vmem:[%s2 + $0xec] sm:$0xf]
  %v2593 = vld [vmem:[%s2 + $0xf0] sm:$0xf]
  %v2594 = vld [vmem:[%s2 + $0xf4] sm:$0xf]
  %v2595 = vld [vmem:[%s2 + $0xf8] sm:$0xf]
  %v2596 = vld [vmem:[%s2 + $0xfc] sm:$0xf]
  %v2597 = vld [vmem:[%s3 + $0x8] sm:$0x1]
  %v2598 = vperm.slane %v2597, 0
  %v2607 = vunpack.c.l.b16 %v2589
  %v2608 = vunpack.c.l.b16 %v2590
  %v2609 = vunpack.c.l.b16 %v2591
  %v2610 = vunpack.c.l.b16 %v2592
  %v2611 = vunpack.c.l.b16 %v2593
  %v2612 = vunpack.c.l.b16 %v2594
  %v2613 = vunpack.c.l.b16 %v2595
  %v2614 = vunpack.c.l.b16 %v2596
  %v2615 = vpack.c.b16 %v2608, %v2607
  %v2616 = vpack.c.b16 %v2610, %v2609
  %v2617 = vpack.c.b16 %v2612, %v2611
  %v2618 = vpack.c.b16 %v2614, %v2613
  %v2624 = vsel %vm426, %v2567, 0
  %v2627 = vsel %vm426, %v2568, 0
  %v2630 = vsel %vm426, %v2569, 0
  %v2633 = vsel %vm426, %v2570, 0
  %v2636 = vsel %vm426, %v2571, 0
  %v2639 = vsel %vm426, %v2572, 0
  %v2642 = vsel %vm426, %v2573, 0
  %v2645 = vsel %vm426, %v2574, 0
  %v2648 = vsel %vm426, %v2575, 0
  %v2651 = vsel %vm426, %v2576, 0
  %v2654 = vsel %vm426, %v2577, 0
  %v2657 = vsel %vm426, %v2578, 0
  %v2660 = vsel %vm426, %v2579, 0
  %v2663 = vsel %vm426, %v2580, 0
  %v2666 = vsel %vm426, %v2581, 0
  %v2669 = vsel %vm426, %v2582, 0
  %v2672 = vsel %vm426, %v2583, 0
  %v2675 = vsel %vm426, %v2584, 0
  %v2678 = vsel %vm426, %v2585, 0
  %v2681 = vsel %vm426, %v2586, 0
  %v2684 = vsel %vm426, %v2587, 0
  %v2687 = vsel %vm426, %v2588, 0
  %2689 = vmatpush.bf16.msra.mxu0 0
  %2690 = vmatpush.bf16.msra.mxu0 0
  %2691 = vmatpush.bf16.msra.mxu0 0
  %2692 = vmatpush.bf16.msra.mxu0 0
  %2693 = vmatpush.bf16.msra.mxu0 %v2618
  %2694 = vmatpush.bf16.msra.mxu0 %v2617
  %2695 = vmatpush.bf16.msra.mxu0 %v2616
  %2696 = vmatpush.bf16.msra.mxu0 %v2615
  %2697 = vmatmul.bf16.gmra.mxu0 %v2624
  %v2698 = vpop.f32.mrf.mxu0
  %v2699 = vadd.f32 %v2598, %v2698
  %v2700 = vpop.f32.mrf.mxu0
  %v2701 = vadd.f32 %v2598, %v2700
  %2702 = vmatmul.bf16.gmra.mxu0 %v2627
  %v2703 = vpop.f32.mrf.mxu0
  %v2704 = vadd.f32 %v2598, %v2703
  %v2705 = vpop.f32.mrf.mxu0
  %v2706 = vadd.f32 %v2598, %v2705
  %2707 = vmatmul.bf16.gmra.mxu0 %v2630
  %v2708 = vpop.f32.mrf.mxu0
  %v2709 = vadd.f32 %v2598, %v2708
  %v2710 = vpop.f32.mrf.mxu0
  %v2711 = vadd.f32 %v2598, %v2710
  %2712 = vmatmul.bf16.gmra.mxu0 %v2633
  %v2713 = vpop.f32.mrf.mxu0
  %v2714 = vadd.f32 %v2598, %v2713
  %v2715 = vpop.f32.mrf.mxu0
  %v2716 = vadd.f32 %v2598, %v2715
  %2717 = vmatmul.bf16.gmra.mxu0 %v2636
  %v2718 = vpop.f32.mrf.mxu0
  %v2719 = vadd.f32 %v2598, %v2718
  %v2720 = vpop.f32.mrf.mxu0
  %v2721 = vadd.f32 %v2598, %v2720
  %2722 = vmatmul.bf16.gmra.mxu0 %v2639
  %v2723 = vpop.f32.mrf.mxu0
  %v2724 = vadd.f32 %v2598, %v2723
  %v2725 = vpop.f32.mrf.mxu0
  %v2726 = vadd.f32 %v2598, %v2725
  %2727 = vmatmul.bf16.gmra.mxu0 %v2642
  %v2728 = vpop.f32.mrf.mxu0
  %v2729 = vadd.f32 %v2598, %v2728
  %v2730 = vpop.f32.mrf.mxu0
  %v2731 = vadd.f32 %v2598, %v2730
  %2732 = vmatmul.bf16.gmra.mxu0 %v2645
  %v2733 = vpop.f32.mrf.mxu0
  %v2734 = vadd.f32 %v2598, %v2733
  %v2735 = vpop.f32.mrf.mxu0
  %v2736 = vadd.f32 %v2598, %v2735
  %2737 = vmatmul.bf16.gmra.mxu0 %v2648
  %v2738 = vpop.f32.mrf.mxu0
  %v2739 = vadd.f32 %v2598, %v2738
  %v2740 = vpop.f32.mrf.mxu0
  %v2741 = vadd.f32 %v2598, %v2740
  %2742 = vmatmul.bf16.gmra.mxu0 %v2651
  %v2743 = vpop.f32.mrf.mxu0
  %v2744 = vadd.f32 %v2598, %v2743
  %v2745 = vpop.f32.mrf.mxu0
  %v2746 = vadd.f32 %v2598, %v2745
  %2747 = vmatmul.bf16.gmra.mxu0 %v2654
  %v2748 = vpop.f32.mrf.mxu0
  %v2749 = vadd.f32 %v2598, %v2748
  %v2750 = vpop.f32.mrf.mxu0
  %v2751 = vadd.f32 %v2598, %v2750
  %2752 = vmatmul.bf16.gmra.mxu0 %v2657
  %v2753 = vpop.f32.mrf.mxu0
  %v2754 = vadd.f32 %v2598, %v2753
  %v2755 = vpop.f32.mrf.mxu0
  %v2756 = vadd.f32 %v2598, %v2755
  %2757 = vmatmul.bf16.gmra.mxu0 %v2660
  %v2758 = vpop.f32.mrf.mxu0
  %v2759 = vadd.f32 %v2598, %v2758
  %v2760 = vpop.f32.mrf.mxu0
  %v2761 = vadd.f32 %v2598, %v2760
  %2762 = vmatmul.bf16.gmra.mxu0 %v2663
  %v2763 = vpop.f32.mrf.mxu0
  %v2764 = vadd.f32 %v2598, %v2763
  %v2765 = vpop.f32.mrf.mxu0
  %v2766 = vadd.f32 %v2598, %v2765
  %2767 = vmatmul.bf16.gmra.mxu0 %v2666
  %v2768 = vpop.f32.mrf.mxu0
  %v2769 = vadd.f32 %v2598, %v2768
  %v2770 = vpop.f32.mrf.mxu0
  %v2771 = vadd.f32 %v2598, %v2770
  %2772 = vmatmul.bf16.gmra.mxu0 %v2669
  %v2773 = vpop.f32.mrf.mxu0
  %v2774 = vadd.f32 %v2598, %v2773
  %v2775 = vpop.f32.mrf.mxu0
  %v2776 = vadd.f32 %v2598, %v2775
  %2777 = vmatmul.bf16.gmra.mxu0 %v2672
  %v2778 = vpop.f32.mrf.mxu0
  %v2779 = vadd.f32 %v2598, %v2778
  %v2780 = vpop.f32.mrf.mxu0
  %v2781 = vadd.f32 %v2598, %v2780
  %2782 = vmatmul.bf16.gmra.mxu0 %v2675
  %v2783 = vpop.f32.mrf.mxu0
  %v2784 = vadd.f32 %v2598, %v2783
  %v2785 = vpop.f32.mrf.mxu0
  %v2786 = vadd.f32 %v2598, %v2785
  %2787 = vmatmul.bf16.gmra.mxu0 %v2678
  %v2788 = vpop.f32.mrf.mxu0
  %v2789 = vadd.f32 %v2598, %v2788
  %v2790 = vpop.f32.mrf.mxu0
  %v2791 = vadd.f32 %v2598, %v2790
  %2792 = vmatmul.bf16.gmra.mxu0 %v2681
  %v2793 = vpop.f32.mrf.mxu0
  %v2794 = vadd.f32 %v2598, %v2793
  %v2795 = vpop.f32.mrf.mxu0
  %v2796 = vadd.f32 %v2598, %v2795
  %2797 = vmatmul.bf16.gmra.mxu0 %v2684
  %v2798 = vpop.f32.mrf.mxu0
  %v2799 = vadd.f32 %v2598, %v2798
  %v2800 = vpop.f32.mrf.mxu0
  %v2801 = vadd.f32 %v2598, %v2800
  %2802 = vmatmul.bf16.gmra.mxu0 %v2687
  %v2803 = vpop.f32.mrf.mxu0
  %v2804 = vadd.f32 %v2598, %v2803
  %v2805 = vpop.f32.mrf.mxu0
  %2806 = vdwg.mxu0
  %2807 = vst.msk [vmem:[%s4] sm:$0xff] %vm426, %v2699
  %2808 = vst.msk [vmem:[%s4 + $0x8] sm:$0xff] %vm426, %v2701
  %2809 = vst.msk [vmem:[%s4 + $0x10] sm:$0xff] %vm426, %v2704
  %2810 = vst.msk [vmem:[%s4 + $0x18] sm:$0xff] %vm426, %v2706
  %2811 = vst.msk [vmem:[%s4 + $0x20] sm:$0xff] %vm426, %v2709
  %2812 = vst.msk [vmem:[%s4 + $0x28] sm:$0xff] %vm426, %v2711
  %2813 = vst.msk [vmem:[%s4 + $0x30] sm:$0xff] %vm426, %v2714
  %2814 = vst.msk [vmem:[%s4 + $0x38] sm:$0xff] %vm426, %v2716
  %2815 = vst.msk [vmem:[%s4 + $0x40] sm:$0xff] %vm426, %v2719
  %2816 = vst.msk [vmem:[%s4 + $0x48] sm:$0xff] %vm426, %v2721
  %2817 = vst.msk [vmem:[%s4 + $0x50] sm:$0xff] %vm426, %v2724
  %2818 = vst.msk [vmem:[%s4 + $0x58] sm:$0xff] %vm426, %v2726
  %2819 = vst.msk [vmem:[%s4 + $0x60] sm:$0xff] %vm426, %v2729
  %2820 = vst.msk [vmem:[%s4 + $0x68] sm:$0xff] %vm426, %v2731
  %2821 = vst.msk [vmem:[%s4 + $0x70] sm:$0xff] %vm426, %v2734
  %2822 = vst.msk [vmem:[%s4 + $0x78] sm:$0xff] %vm426, %v2736
  %2823 = vst.msk [vmem:[%s4 + $0x80] sm:$0xff] %vm426, %v2739
  %2824 = vst.msk [vmem:[%s4 + $0x88] sm:$0xff] %vm426, %v2741
  %2825 = vst.msk [vmem:[%s4 + $0x90] sm:$0xff] %vm426, %v2744
  %2826 = vst.msk [vmem:[%s4 + $0x98] sm:$0xff] %vm426, %v2746
  %2827 = vst.msk [vmem:[%s4 + $0xa0] sm:$0xff] %vm426, %v2749
  %2828 = vst.msk [vmem:[%s4 + $0xa8] sm:$0xff] %vm426, %v2751
  %2829 = vst.msk [vmem:[%s4 + $0xb0] sm:$0xff] %vm426, %v2754
  %2830 = vst.msk [vmem:[%s4 + $0xb8] sm:$0xff] %vm426, %v2756
  %2831 = vst.msk [vmem:[%s4 + $0xc0] sm:$0xff] %vm426, %v2759
  %2832 = vst.msk [vmem:[%s4 + $0xc8] sm:$0xff] %vm426, %v2761
  %2833 = vst.msk [vmem:[%s4 + $0xd0] sm:$0xff] %vm426, %v2764
  %2834 = vst.msk [vmem:[%s4 + $0xd8] sm:$0xff] %vm426, %v2766
  %2835 = vst.msk [vmem:[%s4 + $0xe0] sm:$0xff] %vm426, %v2769
  %2836 = vst.msk [vmem:[%s4 + $0xe8] sm:$0xff] %vm426, %v2771
  %2837 = vst.msk [vmem:[%s4 + $0xf0] sm:$0xff] %vm426, %v2774
  %2838 = vst.msk [vmem:[%s4 + $0xf8] sm:$0xff] %vm426, %v2776
  %2839 = vst.msk [vmem:[%s4 + $0x100] sm:$0xff] %vm426, %v2779
  %2840 = vst.msk [vmem:[%s4 + $0x108] sm:$0xff] %vm426, %v2781
  %2841 = vst.msk [vmem:[%s4 + $0x110] sm:$0xff] %vm426, %v2784
  %2842 = vst.msk [vmem:[%s4 + $0x118] sm:$0xff] %vm426, %v2786
  %2843 = vst.msk [vmem:[%s4 + $0x120] sm:$0xff] %vm426, %v2789
  %2844 = vst.msk [vmem:[%s4 + $0x128] sm:$0xff] %vm426, %v2791
  %2845 = vst.msk [vmem:[%s4 + $0x130] sm:$0xff] %vm426, %v2794
  %2846 = vst.msk [vmem:[%s4 + $0x138] sm:$0xff] %vm426, %v2796
  %2847 = vst.msk [vmem:[%s4 + $0x140] sm:$0xff] %vm426, %v2799
  %2848 = vst.msk [vmem:[%s4 + $0x148] sm:$0xff] %vm426, %v2801
  %vm2849 = vcmask 517120
  %2850 = vst.msk [vmem:[%s4 + $0x150] sm:$0x3] %vm2849, %v2804
  // Predicated region
  $region18: #{fern_forward.1} parent=0 // pred_check
    _
  $region19: #{fern_forward.1} parent=0 // pred_check_branch
    %2852 = sbr.rel (0) target = $region21
  $region20: #{fern_forward.1} parent=0 // pred_region
    _
  $region21: #{fern_forward.1} parent=0 // pred_fallthru
    _
  // Predicated region
  $region22: #{fern_forward.1} parent=0 // pred_check
    _
  $region23: #{fern_forward.1} parent=0 // pred_check_branch
    %2854 = sbr.rel (0) target = $region25
  $region24: #{fern_forward.1} parent=0 // pred_region
    _
  $region25: #{fern_forward.1} parent=0 // pred_fallthru
    _

</llo_original>
